<compile_context>
chip_gen: v7x
topology: tpu7x:2x2x1
jax: 0.10.0
libtpu: 0.0.40
codegen_flags: <defaults>
</compile_context>

<pallas_src>
import jax
import jax.numpy as jnp
import numpy as np
from jax.experimental import pallas as pl
from jax.experimental.pallas import tpu as pltpu

# Geometry implied by fc1 = Linear(512 + 1, 128): 32x32 -> conv(5, s2) -> 14x14 -> maxpool(3)
# -> 4x4, and 32 * 4 * 4 = 512 flattened conv features.
H_IN = 32
C_IN, C_OUT = 3, 32
KH = KW = 5
STRIDE = 2
H_CONV = (H_IN - KH) // STRIDE + 1        # 14
POOL = 3
H_POOL = H_CONV // POOL                   # 4
FLAT = C_OUT * H_POOL * H_POOL            # 512
HALF = H_IN // 2                          # 16   row-pair index range of the phase layout
KPHASE = C_IN * 2 * 2                     # 12   (c, dh, dw)
K_IN = HALF * KPHASE                      # 192  folded-conv contraction dim
N_OUT = POOL * H_POOL                     # 12   conv rows/cols that the 3x3 maxpool reads
NS = N_OUT * C_OUT                        # 384  lanes per kh-phase slab: s*128 + pw*32 + co
N_CAT = 3 * NS                            # 1152 fused conv-matmul N (3 kh-phase slabs)


def fused_kernel(xT_ref, y_ref, wf_ref, bc_ref, w1_ref, w1y_ref, b1_ref,
                 w2_ref, b2_ref, flat_ref, logit_ref):
    """Per batch tile: folded conv + relu + 3x3 maxpool + flatten + fc1(+y) + relu + fc2."""
    bt = flat_ref.shape[0]

    # Folded conv: ONE MXU pass, (bt*16, 192) bf16 @ (192, 1152) bf16 -> f32.
    full = jnp.dot(xT_ref[...], wf_ref[...], preferred_element_type=jnp.float32)
    f3 = full.reshape(bt, HALF, N_CAT)                        # (bt, 16, 1152), free reshape

    # kh row shift: conv[b, oh, :] = sum_a f3[b, oh + a, a-th 384-lane slab], oh = 0..11.
    conv = f3[:, 0:N_OUT, 0:NS]
    conv = conv + f3[:, 1:N_OUT + 1, NS:2 * NS]
    conv = conv + f3[:, 2:N_OUT + 2, 2 * NS:3 * NS]           # (bt, 12, 384)
    conv = jnp.maximum(conv + bc_ref[...], 0.0)               # bias + ReLU

    # MaxPool2d(3).  Lane order is s*128 + pw*32 + co with ow = 3*pw + s, so the ow max is
    # the elementwise max of three 128-lane-aligned slabs ...
    pw_pool = jnp.maximum(
        jnp.maximum(conv[:, :, 0:NS // 3], conv[:, :, NS // 3:2 * NS // 3]),
        conv[:, :, 2 * NS // 3:NS])                           # (bt, 12, 128): lane = pw*32+co
    # ... and the oh max runs on the already lane-reduced tensor (4 groups of 3 rows).
    flat = jnp.concatenate(
        [jnp.max(pw_pool[:, 3 * ph:3 * ph + 3, :], axis=1) for ph in range(H_POOL)],
        axis=1)                                               # (bt, 512): ph*128 + pw*32 + co
    flat_ref[...] = flat                                      # lane-dense f32 store

    # fc1 (512-wide matmul + rank-1 y column + bias) -> ReLU -> fc2 (zero-padded to 128).
    h = jnp.dot(flat.astype(jnp.bfloat16), w1_ref[...], preferred_element_type=jnp.float32)
    h = jnp.maximum(h + y_ref[...] * w1y_ref[...] + b1_ref[...], 0.0)
    logit_ref[...] = (jnp.dot(h.astype(jnp.bfloat16), w2_ref[...],
                              preferred_element_type=jnp.float32) + b2_ref[...])


def _phase_layout(x):
    """(N,3,32,32) -> (N*16, 192) raw-pixel relayout, lane = j*12 + c*4 + dh*2 + dw."""
    n = x.shape[0]
    t = x.reshape(n, C_IN, HALF, 2, HALF, 2)                  # (n, c, i, dh, j, dw)
    t = t.transpose(0, 2, 4, 1, 3, 5)                         # (n, i, j, c, dh, dw)
    return t.reshape(n * HALF, K_IN)


def _fold_conv_weight(conv_w):
    """Torch conv weight (32,3,5,5) -> fused folded matmul weight (192, 1152).

    Column = a*384 + s*128 + pw*32 + co with ow = 3*pw + s (only the 12 conv columns the
    maxpool reads); row = j*12 + c*4 + dh*2 + dw matches _phase_layout.  Built from 0/1
    selector contractions only, so it is exact in f32 (bf16 cast happens at the call site).
    """
    wp = jnp.pad(conv_w.astype(jnp.float32), ((0, 0), (0, 0), (0, 1), (0, 1)))   # (32,3,6,6)
    wr = wp.reshape(C_OUT, C_IN, 3, 2, 3, 2)                  # (co, c, a, dh, b, dw)
    sel = np.zeros((3, HALF, N_OUT), np.float32)              # sel[b, j, ow] = (j == ow + b)
    for b in range(3):
        sel[b, np.arange(N_OUT) + b, np.arange(N_OUT)] = 1.0
    sel = jnp.asarray(sel)
    # wf[a, j, c, dh, dw, ow, co] = sum_b sel[b, j, ow] * wr[co, c, a, dh, b, dw]
    wf = jnp.einsum('bjw,ocahbe->ajchewo', sel, wr)           # (3, 16, 3, 2, 2, 12, 32)
    wf = wf.reshape(3, K_IN, N_OUT, C_OUT)                    # K = j*12 + c*4 + dh*2 + dw
    wf = wf.reshape(3, K_IN, H_POOL, POOL, C_OUT).transpose(0, 1, 3, 2, 4)   # (a, K, s, pw, co)
    return wf.transpose(1, 0, 2, 3, 4).reshape(K_IN, N_CAT)                  # (192, 1152)


def cnn2_forward(x, y, params, *, block_b=64):
    conv_w, conv_b, w1, b1, w2, b2 = params
    n = x.shape[0]
    hidden = w1.shape[0]
    num_classes = w2.shape[0]
    nc_pad = max(128, 128 * ((num_classes + 127) // 128))     # lane-dense logits slab

    # Batch tile: clamp for tiny batches, and split once so a single-tile large batch still
    # yields >= 2 grid steps (v7x 2-TC sharding); always a multiple of 8 (sublane tiling).
    bt = max(8, min(int(block_b), ((n + 7) // 8) * 8))
    bt = ((bt + 7) // 8) * 8
    if n > 16 and (n + bt - 1) // bt < 2:
        bt = (((n + 1) // 2 + 7) // 8) * 8
    n_pad = ((n + bt - 1) // bt) * bt

    y_flat = y.reshape(-1).astype(jnp.float32)
    xb = x.astype(jnp.bfloat16)
    y_pad = y_flat
    if n_pad != n:
        xb = jnp.pad(xb, ((0, n_pad - n), (0, 0), (0, 0), (0, 0)))
        y_pad = jnp.pad(y_flat, ((0, n_pad - n),))

    xT = _phase_layout(xb)                                    # (n_pad*16, 192) bf16, no im2col
    y2 = y_pad.reshape(n_pad, 1)

    wcat = _fold_conv_weight(conv_w).astype(jnp.bfloat16)     # (192, 1152)
    bconv = jnp.tile(conv_b.astype(jnp.float32), (N_OUT,)).reshape(1, NS)
    # fc1: split off the y column; permute conv columns from torch order (c*16 + ph*4 + pw)
    # to the kernel's flat lane order (ph*128 + pw*32 + c).
    w1a = (w1[:, :FLAT].reshape(hidden, C_OUT, H_POOL, H_POOL)
           .transpose(0, 2, 3, 1).reshape(hidden, FLAT).T.astype(jnp.bfloat16))   # (512, 128)
    w1y = w1[:, FLAT].reshape(1, hidden).astype(jnp.float32)
    b1r = b1.reshape(1, hidden).astype(jnp.float32)
    w2p = (jnp.zeros((hidden, nc_pad), jnp.float32)
           .at[:, :num_classes].set(w2.T).astype(jnp.bfloat16))                   # (128, 128)
    b2p = jnp.zeros((1, nc_pad), jnp.float32).at[:, :num_classes].set(b2.reshape(1, -1))

    grid = (n_pad // bt,)
    cost = pl.CostEstimate(
        flops=int(n_pad * (2 * HALF * K_IN * N_CAT + 2 * FLAT * hidden + 2 * hidden * nc_pad)),
        transcendentals=0,
        bytes_accessed=int(n_pad * (HALF * K_IN * 2 + 4 + FLAT * 4 + nc_pad * 4)
                           + K_IN * N_CAT * 2 + FLAT * hidden * 2 + hidden * nc_pad * 2
                           + 4 * (NS + 3 * hidden + nc_pad)))

    flat_ours, logits = pl.pallas_call(
        fused_kernel,
        out_shape=(jax.ShapeDtypeStruct((n_pad, FLAT), jnp.float32),
                   jax.ShapeDtypeStruct((n_pad, nc_pad), jnp.float32)),
        grid=grid,
        in_specs=[
            pl.BlockSpec((bt * HALF, K_IN), lambda i: (i, 0)),      # raw pixels (streamed)
            pl.BlockSpec((bt, 1), lambda i: (i, 0)),                # y
            pl.BlockSpec((K_IN, N_CAT), lambda i: (0, 0)),          # fused folded conv weight
            pl.BlockSpec((1, NS), lambda i: (0, 0)),                # conv bias (lane-tiled)
            pl.BlockSpec((FLAT, hidden), lambda i: (0, 0)),         # fc1 weight (permuted)
            pl.BlockSpec((1, hidden), lambda i: (0, 0)),            # fc1 y column
            pl.BlockSpec((1, hidden), lambda i: (0, 0)),            # fc1 bias
            pl.BlockSpec((hidden, nc_pad), lambda i: (0, 0)),       # fc2 weight (lane-padded)
            pl.BlockSpec((1, nc_pad), lambda i: (0, 0)),            # fc2 bias (lane-padded)
        ],
        out_specs=[
            pl.BlockSpec((bt, FLAT), lambda i: (i, 0)),
            pl.BlockSpec((bt, nc_pad), lambda i: (i, 0)),
        ],
        compiler_params=pltpu.CompilerParams(
            dimension_semantics=("parallel",),
            vmem_limit_bytes=32 * 1024 * 1024),
        cost_estimate=cost,
    )(xT, y2, wcat, bconv, w1a, w1y, b1r, w2p, b2p)

    flat_ours = flat_ours[:n]
    logits = logits[:n, :num_classes]
    # `features` must be in torch flatten order (c*16 + ph*4 + pw), then cat(y): tiny reorder.
    flat_torch = (flat_ours.reshape(n, H_POOL, H_POOL, C_OUT)
                  .transpose(0, 3, 1, 2).reshape(n, FLAT))
    features = jnp.concatenate([flat_torch, y_flat.reshape(n, 1)], axis=1)
    return logits, features


def cnn2_reference(x, y, params):
    """Pure-JAX reference mirroring the PyTorch forward (HIGHEST precision ground truth)."""
    conv_w, conv_b, w1, b1, w2, b2 = params
    n = x.shape[0]
    conv = jax.lax.conv_general_dilated(
        x, conv_w, (STRIDE, STRIDE), "VALID",
        dimension_numbers=("NCHW", "OIHW", "NCHW"),
        precision=jax.lax.Precision.HIGHEST)
    conv = jnp.maximum(conv + conv_b[None, :, None, None], 0.0)
    pooled = jax.lax.reduce_window(conv, -jnp.inf, jax.lax.max,
                                   (1, 1, POOL, POOL), (1, 1, POOL, POOL), "VALID")
    feats = jnp.concatenate([pooled.reshape(n, -1), y.reshape(n, 1)], axis=1)
    h = jnp.maximum(jnp.dot(feats, w1.T, precision=jax.lax.Precision.HIGHEST) + b1, 0.0)
    return jnp.dot(h, w2.T, precision=jax.lax.Precision.HIGHEST) + b2, feats


if __name__ == "__main__":
    num_classes = 2
    key = jax.random.PRNGKey(0)
    ks = jax.random.split(key, 10)
    # Deterministic synthetic parameters (same shapes as the torch module).
    params = (
        jax.random.normal(ks[0], (C_OUT, C_IN, KH, KW), jnp.float32) * 0.1,   # conv.weight
        jax.random.normal(ks[1], (C_OUT,), jnp.float32) * 0.1,                # conv.bias
        jax.random.normal(ks[2], (128, FLAT + 1), jnp.float32) * 0.05,        # fc1.weight
        jax.random.normal(ks[3], (128,), jnp.float32) * 0.05,                 # fc1.bias
        jax.random.normal(ks[4], (num_classes, 128), jnp.float32) * 0.05,     # fc2.weight
        jax.random.normal(ks[5], (num_classes,), jnp.float32) * 0.05,         # fc2.bias
    )
    x = jax.random.normal(ks[6], (2, C_IN, H_IN, H_IN), jnp.float32)
    y = jax.random.normal(ks[7], (2,), jnp.float32)

    fwd = jax.jit(cnn2_forward)
    logits, features = fwd(x, y, params)
    jax.block_until_ready((logits, features))

    ref_logits, ref_features = cnn2_reference(x, y, params)
    # bf16 operands + f32-accumulating MXU dots vs a HIGHEST-precision reference: 2e-2.
    np.testing.assert_allclose(np.asarray(features), np.asarray(ref_features),
                               rtol=2e-2, atol=2e-2)
    np.testing.assert_allclose(np.asarray(logits), np.asarray(ref_logits),
                               rtol=2e-2, atol=2e-2)
    assert logits.shape == (2, num_classes) and features.shape == (2, FLAT + 1)

    # Also exercise the performance configuration (block_b=64 tiles, 3-step grid, batch
    # padding) on a larger batch; slightly looser tolerance (max error grows with count).
    xb = jax.random.normal(ks[8], (160, C_IN, H_IN, H_IN), jnp.float32)
    yb = jax.random.normal(ks[9], (160,), jnp.float32)
    logits_b, features_b = fwd(xb, yb, params)
    jax.block_until_ready((logits_b, features_b))
    ref_logits_b, ref_features_b = cnn2_reference(xb, yb, params)
    np.testing.assert_allclose(np.asarray(features_b), np.asarray(ref_features_b),
                               rtol=5e-2, atol=5e-2)
    np.testing.assert_allclose(np.asarray(logits_b), np.asarray(ref_logits_b),
                               rtol=5e-2, atol=5e-2)

    print("KERNEL_OK")
</pallas_src>

<mosaic_0001>
module attributes {stable_mosaic.version = 11 : i64} {
  func.func @fused_kernel(%arg0: i32, %arg1: memref<128x192xbf16, #tpu.memory_space<vmem>>, %arg2: memref<8x1xf32, #tpu.memory_space<vmem>>, %arg3: memref<192x1152xbf16, #tpu.memory_space<vmem>>, %arg4: memref<1x384xf32, #tpu.memory_space<vmem>>, %arg5: memref<512x128xbf16, #tpu.memory_space<vmem>>, %arg6: memref<1x128xf32, #tpu.memory_space<vmem>>, %arg7: memref<1x128xf32, #tpu.memory_space<vmem>>, %arg8: memref<128x128xbf16, #tpu.memory_space<vmem>>, %arg9: memref<1x128xf32, #tpu.memory_space<vmem>>, %arg10: memref<8x512xf32, #tpu.memory_space<vmem>>, %arg11: memref<8x128xf32, #tpu.memory_space<vmem>>) attributes {dimension_semantics = [#tpu.dimension_semantics<parallel>], iteration_bounds = array<i64: 1>, scalar_prefetch = 0 : i64, scratch_operands = 0 : i64, tpu.core_type = #tpu.core_type<tc>, window_params = [{transform_indices = @transform_0, window_bounds = array<i64: 128, 192>}, {transform_indices = @transform_1, window_bounds = array<i64: 8, 1>}, {pipeline_mode = #tpu.pipeline_mode<synchronous>, transform_indices = @transform_2, window_bounds = array<i64: 192, 1152>}, {pipeline_mode = #tpu.pipeline_mode<synchronous>, transform_indices = @transform_3, window_bounds = array<i64: 1, 384>}, {pipeline_mode = #tpu.pipeline_mode<synchronous>, transform_indices = @transform_4, window_bounds = array<i64: 512, 128>}, {pipeline_mode = #tpu.pipeline_mode<synchronous>, transform_indices = @transform_5, window_bounds = array<i64: 1, 128>}, {pipeline_mode = #tpu.pipeline_mode<synchronous>, transform_indices = @transform_6, window_bounds = array<i64: 1, 128>}, {pipeline_mode = #tpu.pipeline_mode<synchronous>, transform_indices = @transform_7, window_bounds = array<i64: 128, 128>}, {pipeline_mode = #tpu.pipeline_mode<synchronous>, transform_indices = @transform_8, window_bounds = array<i64: 1, 128>}, {transform_indices = @transform_9, window_bounds = array<i64: 8, 512>}, {transform_indices = @transform_10, window_bounds = array<i64: 8, 128>}]} {
    %c0 = arith.constant 0 : index
    %c0_0 = arith.constant 0 : index
    %0 = vector.load %arg1[%c0, %c0_0] : memref<128x192xbf16, #tpu.memory_space<vmem>>, vector<128x192xbf16>
    %c0_1 = arith.constant 0 : index
    %c0_2 = arith.constant 0 : index
    %1 = vector.load %arg3[%c0_1, %c0_2] : memref<192x1152xbf16, #tpu.memory_space<vmem>>, vector<192x1152xbf16>
    %cst = arith.constant dense<0.000000e+00> : vector<128x1152xf32>
    %2 = tpu.matmul %0, %1, %cst {dimension_numbers = #tpu.dot_dimension_numbers<[1], [0], [0], [1], [0, 0, 1, 1], [], []>} : vector<128x192xbf16>, vector<192x1152xbf16>, vector<128x1152xf32> -> vector<128x1152xf32>
    %3 = vector.shape_cast %2 : vector<128x1152xf32> to vector<8x16x1152xf32>
    %4 = vector.extract_strided_slice %3 {offsets = [0, 0, 0], sizes = [8, 12, 384], strides = [1, 1, 1]} : vector<8x16x1152xf32> to vector<8x12x384xf32>
    %5 = vector.extract_strided_slice %3 {offsets = [0, 1, 384], sizes = [8, 12, 384], strides = [1, 1, 1]} : vector<8x16x1152xf32> to vector<8x12x384xf32>
    %6 = arith.addf %4, %5 : vector<8x12x384xf32>
    %7 = vector.extract_strided_slice %3 {offsets = [0, 2, 768], sizes = [8, 12, 384], strides = [1, 1, 1]} : vector<8x16x1152xf32> to vector<8x12x384xf32>
    %8 = arith.addf %6, %7 : vector<8x12x384xf32>
    %c0_3 = arith.constant 0 : index
    %c0_4 = arith.constant 0 : index
    %9 = vector.load %arg4[%c0_3, %c0_4] : memref<1x384xf32, #tpu.memory_space<vmem>>, vector<1x384xf32>
    %10 = vector.shape_cast %9 : vector<1x384xf32> to vector<1x1x384xf32>
    %11 = vector.broadcast %10 : vector<1x1x384xf32> to vector<8x12x384xf32>
    %12 = arith.addf %8, %11 : vector<8x12x384xf32>
    %cst_5 = arith.constant 0.000000e+00 : f32
    %13 = vector.broadcast %cst_5 : f32 to vector<8x12x384xf32>
    %14 = arith.maximumf %12, %13 : vector<8x12x384xf32>
    %15 = vector.extract_strided_slice %14 {offsets = [0, 0, 0], sizes = [8, 12, 128], strides = [1, 1, 1]} : vector<8x12x384xf32> to vector<8x12x128xf32>
    %16 = vector.extract_strided_slice %14 {offsets = [0, 0, 128], sizes = [8, 12, 128], strides = [1, 1, 1]} : vector<8x12x384xf32> to vector<8x12x128xf32>
    %17 = arith.maximumf %15, %16 : vector<8x12x128xf32>
    %18 = vector.extract_strided_slice %14 {offsets = [0, 0, 256], sizes = [8, 12, 128], strides = [1, 1, 1]} : vector<8x12x384xf32> to vector<8x12x128xf32>
    %19 = arith.maximumf %17, %18 : vector<8x12x128xf32>
    %20 = vector.extract_strided_slice %19 {offsets = [0, 0, 0], sizes = [8, 3, 128], strides = [1, 1, 1]} : vector<8x12x128xf32> to vector<8x3x128xf32>
    %cst_6 = arith.constant dense<0xFF800000> : vector<8x128xf32>
    %21 = vector.multi_reduction <maximumf>, %20, %cst_6 [1] : vector<8x3x128xf32> to vector<8x128xf32>
    %22 = vector.extract_strided_slice %19 {offsets = [0, 3, 0], sizes = [8, 3, 128], strides = [1, 1, 1]} : vector<8x12x128xf32> to vector<8x3x128xf32>
    %cst_7 = arith.constant dense<0xFF800000> : vector<8x128xf32>
    %23 = vector.multi_reduction <maximumf>, %22, %cst_7 [1] : vector<8x3x128xf32> to vector<8x128xf32>
    %24 = vector.extract_strided_slice %19 {offsets = [0, 6, 0], sizes = [8, 3, 128], strides = [1, 1, 1]} : vector<8x12x128xf32> to vector<8x3x128xf32>
    %cst_8 = arith.constant dense<0xFF800000> : vector<8x128xf32>
    %25 = vector.multi_reduction <maximumf>, %24, %cst_8 [1] : vector<8x3x128xf32> to vector<8x128xf32>
    %26 = vector.extract_strided_slice %19 {offsets = [0, 9, 0], sizes = [8, 3, 128], strides = [1, 1, 1]} : vector<8x12x128xf32> to vector<8x3x128xf32>
    %cst_9 = arith.constant dense<0xFF800000> : vector<8x128xf32>
    %27 = vector.multi_reduction <maximumf>, %26, %cst_9 [1] : vector<8x3x128xf32> to vector<8x128xf32>
    %28 = tpu.concatenate %21, %23, %25, %27 in 1 : vector<8x128xf32>, vector<8x128xf32>, vector<8x128xf32>, vector<8x128xf32> -> vector<8x512xf32>
    %c0_10 = arith.constant 0 : index
    %c0_11 = arith.constant 0 : index
    %29 = vector.load %arg10[%c0_10, %c0_11] : memref<8x512xf32, #tpu.memory_space<vmem>>, vector<8x512xf32>
    tpu.vector_store %arg10[%c0_10, %c0_11], %28 {strides = array<i32>} : memref<8x512xf32, #tpu.memory_space<vmem>>, vector<8x512xf32>,
    %30 = arith.truncf %28 : vector<8x512xf32> to vector<8x512xbf16>
    %c0_12 = arith.constant 0 : index
    %c0_13 = arith.constant 0 : index
    %31 = vector.load %arg5[%c0_12, %c0_13] : memref<512x128xbf16, #tpu.memory_space<vmem>>, vector<512x128xbf16>
    %cst_14 = arith.constant dense<0.000000e+00> : vector<8x128xf32>
    %32 = tpu.matmul %30, %31, %cst_14 {dimension_numbers = #tpu.dot_dimension_numbers<[1], [0], [0], [1], [0, 0, 1, 1], [], []>} : vector<8x512xbf16>, vector<512x128xbf16>, vector<8x128xf32> -> vector<8x128xf32>
    %c0_15 = arith.constant 0 : index
    %c0_16 = arith.constant 0 : index
    %33 = vector.load %arg2[%c0_15, %c0_16] : memref<8x1xf32, #tpu.memory_space<vmem>>, vector<8x1xf32>
    %c0_17 = arith.constant 0 : index
    %c0_18 = arith.constant 0 : index
    %34 = vector.load %arg6[%c0_17, %c0_18] : memref<1x128xf32, #tpu.memory_space<vmem>>, vector<1x128xf32>
    %35 = vector.broadcast %33 : vector<8x1xf32> to vector<8x128xf32>
    %36 = vector.broadcast %34 : vector<1x128xf32> to vector<8x128xf32>
    %37 = arith.mulf %35, %36 : vector<8x128xf32>
    %38 = arith.addf %32, %37 : vector<8x128xf32>
    %c0_19 = arith.constant 0 : index
    %c0_20 = arith.constant 0 : index
    %39 = vector.load %arg7[%c0_19, %c0_20] : memref<1x128xf32, #tpu.memory_space<vmem>>, vector<1x128xf32>
    %40 = vector.broadcast %39 : vector<1x128xf32> to vector<8x128xf32>
    %41 = arith.addf %38, %40 : vector<8x128xf32>
    %cst_21 = arith.constant 0.000000e+00 : f32
    %42 = vector.broadcast %cst_21 : f32 to vector<8x128xf32>
    %43 = arith.maximumf %41, %42 : vector<8x128xf32>
    %44 = arith.truncf %43 : vector<8x128xf32> to vector<8x128xbf16>
    %c0_22 = arith.constant 0 : index
    %c0_23 = arith.constant 0 : index
    %45 = vector.load %arg8[%c0_22, %c0_23] : memref<128x128xbf16, #tpu.memory_space<vmem>>, vector<128x128xbf16>
    %cst_24 = arith.constant dense<0.000000e+00> : vector<8x128xf32>
    %46 = tpu.matmul %44, %45, %cst_24 {dimension_numbers = #tpu.dot_dimension_numbers<[1], [0], [0], [1], [0, 0, 1, 1], [], []>} : vector<8x128xbf16>, vector<128x128xbf16>, vector<8x128xf32> -> vector<8x128xf32>
    %c0_25 = arith.constant 0 : index
    %c0_26 = arith.constant 0 : index
    %47 = vector.load %arg9[%c0_25, %c0_26] : memref<1x128xf32, #tpu.memory_space<vmem>>, vector<1x128xf32>
    %48 = vector.broadcast %47 : vector<1x128xf32> to vector<8x128xf32>
    %49 = arith.addf %46, %48 : vector<8x128xf32>
    %c0_27 = arith.constant 0 : index
    %c0_28 = arith.constant 0 : index
    %50 = vector.load %arg11[%c0_27, %c0_28] : memref<8x128xf32, #tpu.memory_space<vmem>>, vector<8x128xf32>
    tpu.vector_store %arg11[%c0_27, %c0_28], %49 {strides = array<i32>} : memref<8x128xf32, #tpu.memory_space<vmem>>, vector<8x128xf32>,
    return
  }
  func.func @transform_0(%arg0: i32) -> (i32, i32) {
    %c0_i32 = arith.constant 0 : i32
    %c0_i32_0 = arith.constant 0 : i32
    return %arg0, %c0_i32 : i32, i32
  }
  func.func @transform_1(%arg0: i32) -> (i32, i32) {
    %c0_i32 = arith.constant 0 : i32
    %c0_i32_0 = arith.constant 0 : i32
    return %arg0, %c0_i32 : i32, i32
  }
  func.func @transform_2(%arg0: i32) -> (i32, i32) {
    %c0_i32 = arith.constant 0 : i32
    %c0_i32_0 = arith.constant 0 : i32
    %c0_i32_1 = arith.constant 0 : i32
    return %c0_i32, %c0_i32_0 : i32, i32
  }
  func.func @transform_3(%arg0: i32) -> (i32, i32) {
    %c0_i32 = arith.constant 0 : i32
    %c0_i32_0 = arith.constant 0 : i32
    %c0_i32_1 = arith.constant 0 : i32
    return %c0_i32, %c0_i32_0 : i32, i32
  }
  func.func @transform_4(%arg0: i32) -> (i32, i32) {
    %c0_i32 = arith.constant 0 : i32
    %c0_i32_0 = arith.constant 0 : i32
    %c0_i32_1 = arith.constant 0 : i32
    return %c0_i32, %c0_i32_0 : i32, i32
  }
  func.func @transform_5(%arg0: i32) -> (i32, i32) {
    %c0_i32 = arith.constant 0 : i32
    %c0_i32_0 = arith.constant 0 : i32
    %c0_i32_1 = arith.constant 0 : i32
    return %c0_i32, %c0_i32_0 : i32, i32
  }
  func.func @transform_6(%arg0: i32) -> (i32, i32) {
    %c0_i32 = arith.constant 0 : i32
    %c0_i32_0 = arith.constant 0 : i32
    %c0_i32_1 = arith.constant 0 : i32
    return %c0_i32, %c0_i32_0 : i32, i32
  }
  func.func @transform_7(%arg0: i32) -> (i32, i32) {
    %c0_i32 = arith.constant 0 : i32
    %c0_i32_0 = arith.constant 0 : i32
    %c0_i32_1 = arith.constant 0 : i32
    return %c0_i32, %c0_i32_0 : i32, i32
  }
  func.func @transform_8(%arg0: i32) -> (i32, i32) {
    %c0_i32 = arith.constant 0 : i32
    %c0_i32_0 = arith.constant 0 : i32
    %c0_i32_1 = arith.constant 0 : i32
    return %c0_i32, %c0_i32_0 : i32, i32
  }
  func.func @transform_9(%arg0: i32) -> (i32, i32) {
    %c0_i32 = arith.constant 0 : i32
    %c0_i32_0 = arith.constant 0 : i32
    return %arg0, %c0_i32 : i32, i32
  }
  func.func @transform_10(%arg0: i32) -> (i32, i32) {
    %c0_i32 = arith.constant 0 : i32
    %c0_i32_0 = arith.constant 0 : i32
    return %arg0, %c0_i32 : i32, i32
  }
}

</mosaic_0001>

<llo_original>
// kernel: tile.8
$region0: #{tile.8}
  #allocation0 [shape = 's32[1]{0}', space=sflag, size = 0x4, scoped, tag = 'scoped memory for tile.8']
  %s0 = inlined_call_operand.vmem [shape: f32[32], index: 0, kind: input, shape index: {}]
  %s1 = inlined_call_operand.vmem [shape: f32[12,32], index: 1, kind: output, shape index: {}]
  // Predicated region
  $region2: #{tile.8} parent=0 // pred_check
    _
  $region3: #{tile.8} parent=0 // pred_check_branch
    %3 = sbr.rel (0) target = $region5
  $region4: #{tile.8} parent=0 // pred_region
    _
  $region5: #{tile.8} parent=0 // pred_fallthru
    _
  %v4 = vld [vmem:[%s0] ss:$0 sm:$0xff]
  %5 = vst [vmem:[%s1] sm:$0xff] %v4
  %s6 = scalar_lea.vmem %s1, 8
  %7 = vst [vmem:[%s6] sm:$0xff] %v4

// kernel: tile.9
$region0: #{tile.9}
  %s0 = inlined_call_operand.vmem [shape: f32[12,32], index: 0, kind: input, shape index: {}]
  %s1 = inlined_call_operand.vmem [shape: f32[1,384], index: 1, kind: output, shape index: {}]
  $region1: #{tile.9} parent=0
    #allocation0 [shape = 'u8[12288]{0}', space=vmem, size = 0x3000, scoped, tag = 'scoped mem for output reshape']
    %v2 = vld [vmem:[%s0] ss:$4 sm:$0x7]
    %vm3 = vcmask 261120
    %4 = vst.msk [vmem:[#allocation0] ss:$8 sm:$0x7] %vm3, %v2
    %s5 = scalar_lea.vmem %s0, 3
    %v6 = vld [vmem:[%s5] ss:$4 sm:$0x7]
    %7 = vrot.lane.b32.xlu0 %v6, 96
    %v8 = vpop.permute.xlu0 %7
    %vm9 = vcmask 1048320
    %10 = vst.msk [vmem:[#allocation0] ss:$8 sm:$0x7] %vm9, %v8
    %s11 = scalar_lea.vmem %s0, 2
    %v12 = vld [vmem:[%s11] ss:$4 sm:$0x7]
    %13 = vrot.lane.b32.xlu0 %v12, 64
    %v14 = vpop.permute.xlu0 %13
    %vm15 = vcmask 785920
    %16 = vst.msk [vmem:[#allocation0] ss:$8 sm:$0x7] %vm15, %v14
    %s17 = scalar_lea.vmem %s0, 1
    %v18 = vld [vmem:[%s17] ss:$4 sm:$0x7]
    %19 = vrot.lane.b32.xlu0 %v18, 32
    %v20 = vpop.permute.xlu0 %19
    %vm21 = vcmask 523520
    %22 = vst.msk [vmem:[#allocation0] ss:$8 sm:$0x7] %vm21, %v20
    %s24 = sshllo.u32 0, 1
    %v26 = vld [vmem:[#allocation0] sm:%s24]
    %s27 = sshllo.u32 0, 1
    %28 = vst [vmem:[%s1] sm:%s27] %v26
    %s29 = scalar_lea.vmem [#allocation0], 8
    %v30 = vld [vmem:[%s29] sm:%s24]
    %s31 = sshllo.u32 0, 1
    %s32 = scalar_lea.vmem %s1, 1
    %33 = vst [vmem:[%s32] sm:%s31] %v30
    %s34 = scalar_lea.vmem [#allocation0], 16
    %v35 = vld [vmem:[%s34] sm:%s24]
    %s36 = sshllo.u32 0, 1
    %s37 = smul.addr 1, 2
    %s38 = scalar_lea.vmem %s1, %s37
    %39 = vst [vmem:[%s38] sm:%s36] %v35

// kernel: cnn2_forward.1
$region0: #{cnn2_forward.1}
  #allocation0 [shape = 'u32[]', space=smem, size = 0x4, offset = 0x4, fixed_abs, tag = 'smem constant byte address 0x4 - core index']
  #allocation1 [shape = 'u32[144,128]{1,0:T(1,128)}', space=vmem, size = 0x12000, scoped, tag = 'internal scratch']
  %s0 = inlined_call_operand.vmem [shape: bf16[128,192], index: 0, kind: input, shape index: {}]
  %s1 = inlined_call_operand.vmem [shape: f32[8,1], index: 1, kind: input, shape index: {}]
  %s2 = inlined_call_operand.vmem [shape: bf16[192,1152], index: 2, kind: input, shape index: {}]
  %s3 = inlined_call_operand.vmem [shape: f32[1,384], index: 3, kind: input, shape index: {}]
  %s4 = inlined_call_operand.vmem [shape: bf16[512,128], index: 4, kind: input, shape index: {}]
  %s5 = inlined_call_operand.vmem [shape: f32[1,128], index: 5, kind: input, shape index: {}]
  %s6 = inlined_call_operand.vmem [shape: f32[1,128], index: 6, kind: input, shape index: {}]
  %s7 = inlined_call_operand.vmem [shape: bf16[128,128], index: 7, kind: input, shape index: {}]
  %s8 = inlined_call_operand.vmem [shape: f32[1,128], index: 8, kind: input, shape index: {}]
  %s9 = inlined_call_operand.vmem [shape: f32[8,512], index: 9, kind: output, shape index: {0}]
  %s10 = inlined_call_operand.vmem [shape: f32[8,128], index: 10, kind: output, shape index: {1}]
  %11 = xla_tuple %s9, %s10
  %s12 = sld [smem:[#allocation0]]
  $region54: #{cnn2_forward.1} parent=0
    _
  %s14 = ssub.s32 1, %s12
  %s15 = scalar_select 0, %s14, %s12
  // Predicated region
  $region2: #{cnn2_forward.1} parent=0 // pred_check
    _
  $region3: #{cnn2_forward.1} parent=0 // pred_check_branch
    %17 = sbr.rel (0) target = $region5
  $region4: #{cnn2_forward.1} parent=0 // pred_region
    _
  $region5: #{cnn2_forward.1} parent=0 // pred_fallthru
    _
  // Predicated region
  $region6: #{cnn2_forward.1} parent=0 // pred_check
    _
  $region7: #{cnn2_forward.1} parent=0 // pred_check_branch
    %19 = sbr.rel (0) target = $region9
  $region8: #{cnn2_forward.1} parent=0 // pred_region
    _
  $region9: #{cnn2_forward.1} parent=0 // pred_fallthru
    _
  // Predicated region
  $region10: #{cnn2_forward.1} parent=0 // pred_check
    _
  $region11: #{cnn2_forward.1} parent=0 // pred_check_branch
    %21 = sbr.rel (0) target = $region13
  $region12: #{cnn2_forward.1} parent=0 // pred_region
    _
  $region13: #{cnn2_forward.1} parent=0 // pred_fallthru
    _
  // Predicated region
  $region14: #{cnn2_forward.1} parent=0 // pred_check
    _
  $region15: #{cnn2_forward.1} parent=0 // pred_check_branch
    %23 = sbr.rel (0) target = $region17
  $region16: #{cnn2_forward.1} parent=0 // pred_region
    _
  $region17: #{cnn2_forward.1} parent=0 // pred_fallthru
    _
  // Predicated region
  $region18: #{cnn2_forward.1} parent=0 // pred_check
    _
  $region19: #{cnn2_forward.1} parent=0 // pred_check_branch
    %25 = sbr.rel (0) target = $region21
  $region20: #{cnn2_forward.1} parent=0 // pred_region
    _
  $region21: #{cnn2_forward.1} parent=0 // pred_fallthru
    _
  // Predicated region
  $region22: #{cnn2_forward.1} parent=0 // pred_check
    _
  $region23: #{cnn2_forward.1} parent=0 // pred_check_branch
    %27 = sbr.rel (0) target = $region25
  $region24: #{cnn2_forward.1} parent=0 // pred_region
    _
  $region25: #{cnn2_forward.1} parent=0 // pred_fallthru
    _
  // Predicated region
  $region26: #{cnn2_forward.1} parent=0 // pred_check
    _
  $region27: #{cnn2_forward.1} parent=0 // pred_check_branch
    %29 = sbr.rel (0) target = $region29
  $region28: #{cnn2_forward.1} parent=0 // pred_region
    _
  $region29: #{cnn2_forward.1} parent=0 // pred_fallthru
    _
  // Predicated region
  $region30: #{cnn2_forward.1} parent=0 // pred_check
    _
  $region31: #{cnn2_forward.1} parent=0 // pred_check_branch
    %31 = sbr.rel (0) target = $region33
  $region32: #{cnn2_forward.1} parent=0 // pred_region
    _
  $region33: #{cnn2_forward.1} parent=0 // pred_fallthru
    _
  // Predicated region
  $region34: #{cnn2_forward.1} parent=0 // pred_check
    _
  $region35: #{cnn2_forward.1} parent=0 // pred_check_branch
    %33 = sbr.rel (0) target = $region37
  $region36: #{cnn2_forward.1} parent=0 // pred_region
    _
  $region37: #{cnn2_forward.1} parent=0 // pred_fallthru
    _
  %v35 = vld [vmem:[%s0] sm:$0xff]
  %v36 = vld [vmem:[%s0 + $0x8] sm:$0xff]
  %v37 = vld [vmem:[%s0 + $0x10] sm:$0xff]
  %v38 = vld [vmem:[%s0 + $0x18] sm:$0xff]
  %v39 = vld [vmem:[%s0 + $0x20] sm:$0xff]
  %v40 = vld [vmem:[%s0 + $0x28] sm:$0xff]
  %v41 = vld [vmem:[%s0 + $0x30] sm:$0xff]
  %v42 = vld [vmem:[%s0 + $0x38] sm:$0xff]
  %v43 = vld [vmem:[%s0 + $0x40] sm:$0xff]
  %v44 = vld [vmem:[%s0 + $0x48] sm:$0xff]
  %v45 = vld [vmem:[%s0 + $0x50] sm:$0xff]
  %v46 = vld [vmem:[%s0 + $0x58] sm:$0xff]
  %v47 = vld [vmem:[%s0 + $0x60] sm:$0xff]
  %v48 = vld [vmem:[%s0 + $0x68] sm:$0xff]
  %v49 = vld [vmem:[%s0 + $0x70] sm:$0xff]
  %v50 = vld [vmem:[%s0 + $0x78] sm:$0xff]
  %v51 = vld [vmem:[%s2] sm:$0xff]
  %v52 = vld [vmem:[%s2 + $0x8] sm:$0xff]
  %v53 = vld [vmem:[%s2 + $0x10] sm:$0xff]
  %v54 = vld [vmem:[%s2 + $0x18] sm:$0xff]
  %v55 = vld [vmem:[%s2 + $0x20] sm:$0xf]
  %v56 = vld [vmem:[%s2 + $0x24] sm:$0xff]
  %v57 = vld [vmem:[%s2 + $0x2c] sm:$0xff]
  %v58 = vld [vmem:[%s2 + $0x34] sm:$0xff]
  %v59 = vld [vmem:[%s2 + $0x3c] sm:$0xff]
  %v60 = vld [vmem:[%s2 + $0x44] sm:$0xf]
  %v61 = vld [vmem:[%s2 + $0x48] sm:$0xff]
  %v62 = vld [vmem:[%s2 + $0x50] sm:$0xff]
  %v63 = vld [vmem:[%s2 + $0x58] sm:$0xff]
  %v64 = vld [vmem:[%s2 + $0x60] sm:$0xff]
  %v65 = vld [vmem:[%s2 + $0x68] sm:$0xf]
  %v66 = vld [vmem:[%s2 + $0x6c] sm:$0xff]
  %v67 = vld [vmem:[%s2 + $0x74] sm:$0xff]
  %v68 = vld [vmem:[%s2 + $0x7c] sm:$0xff]
  %v69 = vld [vmem:[%s2 + $0x84] sm:$0xff]
  %v70 = vld [vmem:[%s2 + $0x8c] sm:$0xf]
  %v71 = vld [vmem:[%s2 + $0x90] sm:$0xff]
  %v72 = vld [vmem:[%s2 + $0x98] sm:$0xff]
  %v73 = vld [vmem:[%s2 + $0xa0] sm:$0xff]
  %v74 = vld [vmem:[%s2 + $0xa8] sm:$0xff]
  %v75 = vld [vmem:[%s2 + $0xb0] sm:$0xf]
  %v76 = vld [vmem:[%s2 + $0xb4] sm:$0xff]
  %v77 = vld [vmem:[%s2 + $0xbc] sm:$0xff]
  %v78 = vld [vmem:[%s2 + $0xc4] sm:$0xff]
  %v79 = vld [vmem:[%s2 + $0xcc] sm:$0xff]
  %v80 = vld [vmem:[%s2 + $0xd4] sm:$0xf]
  %v81 = vld [vmem:[%s2 + $0xd8] sm:$0xff]
  %v82 = vld [vmem:[%s2 + $0xe0] sm:$0xff]
  %v83 = vld [vmem:[%s2 + $0xe8] sm:$0xff]
  %v84 = vld [vmem:[%s2 + $0xf0] sm:$0xff]
  %v85 = vld [vmem:[%s2 + $0xf8] sm:$0xf]
  %v86 = vld [vmem:[%s2 + $0xfc] sm:$0xff]
  %v87 = vld [vmem:[%s2 + $0x104] sm:$0xff]
  %v88 = vld [vmem:[%s2 + $0x10c] sm:$0xff]
  %v89 = vld [vmem:[%s2 + $0x114] sm:$0xff]
  %v90 = vld [vmem:[%s2 + $0x11c] sm:$0xf]
  %v91 = vld [vmem:[%s2 + $0x120] sm:$0xff]
  %v92 = vld [vmem:[%s2 + $0x128] sm:$0xff]
  %v93 = vld [vmem:[%s2 + $0x130] sm:$0xff]
  %v94 = vld [vmem:[%s2 + $0x138] sm:$0xff]
  %v95 = vld [vmem:[%s2 + $0x140] sm:$0xf]
  %v96 = vld [vmem:[%s2 + $0x144] sm:$0xff]
  %v97 = vld [vmem:[%s2 + $0x14c] sm:$0xff]
  %v98 = vld [vmem:[%s2 + $0x154] sm:$0xff]
  %v99 = vld [vmem:[%s2 + $0x15c] sm:$0xff]
  %v100 = vld [vmem:[%s2 + $0x164] sm:$0xf]
  %v101 = vld [vmem:[%s2 + $0x168] sm:$0xff]
  %v102 = vld [vmem:[%s2 + $0x170] sm:$0xff]
  %v103 = vld [vmem:[%s2 + $0x178] sm:$0xff]
  %v104 = vld [vmem:[%s2 + $0x180] sm:$0xff]
  %v105 = vld [vmem:[%s2 + $0x188] sm:$0xf]
  %v106 = vld [vmem:[%s2 + $0x18c] sm:$0xff]
  %v107 = vld [vmem:[%s2 + $0x194] sm:$0xff]
  %v108 = vld [vmem:[%s2 + $0x19c] sm:$0xff]
  %v109 = vld [vmem:[%s2 + $0x1a4] sm:$0xff]
  %v110 = vld [vmem:[%s2 + $0x1ac] sm:$0xf]
  %v111 = vld [vmem:[%s2 + $0x1b0] sm:$0xff]
  %v112 = vld [vmem:[%s2 + $0x1b8] sm:$0xff]
  %v113 = vld [vmem:[%s2 + $0x1c0] sm:$0xff]
  %v114 = vld [vmem:[%s2 + $0x1c8] sm:$0xff]
  %v115 = vld [vmem:[%s2 + $0x1d0] sm:$0xf]
  %v116 = vld [vmem:[%s2 + $0x1d4] sm:$0xff]
  %v117 = vld [vmem:[%s2 + $0x1dc] sm:$0xff]
  %v118 = vld [vmem:[%s2 + $0x1e4] sm:$0xff]
  %v119 = vld [vmem:[%s2 + $0x1ec] sm:$0xff]
  %v120 = vld [vmem:[%s2 + $0x1f4] sm:$0xf]
  %v121 = vld [vmem:[%s2 + $0x1f8] sm:$0xff]
  %v122 = vld [vmem:[%s2 + $0x200] sm:$0xff]
  %v123 = vld [vmem:[%s2 + $0x208] sm:$0xff]
  %v124 = vld [vmem:[%s2 + $0x210] sm:$0xff]
  %v125 = vld [vmem:[%s2 + $0x218] sm:$0xf]
  %v126 = vld [vmem:[%s2 + $0x21c] sm:$0xff]
  %v127 = vld [vmem:[%s2 + $0x224] sm:$0xff]
  %v128 = vld [vmem:[%s2 + $0x22c] sm:$0xff]
  %v129 = vld [vmem:[%s2 + $0x234] sm:$0xff]
  %v130 = vld [vmem:[%s2 + $0x23c] sm:$0xf]
  %v131 = vld [vmem:[%s2 + $0x240] sm:$0xff]
  %v132 = vld [vmem:[%s2 + $0x248] sm:$0xff]
  %v133 = vld [vmem:[%s2 + $0x250] sm:$0xff]
  %v134 = vld [vmem:[%s2 + $0x258] sm:$0xff]
  %v135 = vld [vmem:[%s2 + $0x260] sm:$0xf]
  %v136 = vld [vmem:[%s2 + $0x264] sm:$0xff]
  %v137 = vld [vmem:[%s2 + $0x26c] sm:$0xff]
  %v138 = vld [vmem:[%s2 + $0x274] sm:$0xff]
  %v139 = vld [vmem:[%s2 + $0x27c] sm:$0xff]
  %v140 = vld [vmem:[%s2 + $0x284] sm:$0xf]
  %v141 = vld [vmem:[%s2 + $0x288] sm:$0xff]
  %v142 = vld [vmem:[%s2 + $0x290] sm:$0xff]
  %v143 = vld [vmem:[%s2 + $0x298] sm:$0xff]
  %v144 = vld [vmem:[%s2 + $0x2a0] sm:$0xff]
  %v145 = vld [vmem:[%s2 + $0x2a8] sm:$0xf]
  %v146 = vld [vmem:[%s2 + $0x2ac] sm:$0xff]
  %v147 = vld [vmem:[%s2 + $0x2b4] sm:$0xff]
  %v148 = vld [vmem:[%s2 + $0x2bc] sm:$0xff]
  %v149 = vld [vmem:[%s2 + $0x2c4] sm:$0xff]
  %v150 = vld [vmem:[%s2 + $0x2cc] sm:$0xf]
  %v151 = vld [vmem:[%s2 + $0x2d0] sm:$0xff]
  %v152 = vld [vmem:[%s2 + $0x2d8] sm:$0xff]
  %v153 = vld [vmem:[%s2 + $0x2e0] sm:$0xff]
  %v154 = vld [vmem:[%s2 + $0x2e8] sm:$0xff]
  %v155 = vld [vmem:[%s2 + $0x2f0] sm:$0xf]
  %v156 = vld [vmem:[%s2 + $0x2f4] sm:$0xff]
  %v157 = vld [vmem:[%s2 + $0x2fc] sm:$0xff]
  %v158 = vld [vmem:[%s2 + $0x304] sm:$0xff]
  %v159 = vld [vmem:[%s2 + $0x30c] sm:$0xff]
  %v160 = vld [vmem:[%s2 + $0x314] sm:$0xf]
  %v161 = vld [vmem:[%s2 + $0x318] sm:$0xff]
  %v162 = vld [vmem:[%s2 + $0x320] sm:$0xff]
  %v163 = vld [vmem:[%s2 + $0x328] sm:$0xff]
  %v164 = vld [vmem:[%s2 + $0x330] sm:$0xff]
  %v165 = vld [vmem:[%s2 + $0x338] sm:$0xf]
  %v166 = vld [vmem:[%s2 + $0x33c] sm:$0xff]
  %v167 = vld [vmem:[%s2 + $0x344] sm:$0xff]
  %v168 = vld [vmem:[%s2 + $0x34c] sm:$0xff]
  %v169 = vld [vmem:[%s2 + $0x354] sm:$0xff]
  %v170 = vld [vmem:[%s2 + $0x35c] sm:$0xf]
  %v187 = vunpack.c.l.b16 %v35
  %v188 = vunpack.c.h.b16 %v35
  %v189 = vunpack.c.l.b16 %v36
  %v190 = vunpack.c.h.b16 %v36
  %v191 = vunpack.c.l.b16 %v37
  %v192 = vunpack.c.h.b16 %v37
  %v193 = vunpack.c.l.b16 %v38
  %v194 = vunpack.c.h.b16 %v38
  %v195 = vunpack.c.l.b16 %v39
  %v196 = vunpack.c.h.b16 %v39
  %v197 = vunpack.c.l.b16 %v40
  %v198 = vunpack.c.h.b16 %v40
  %v199 = vunpack.c.l.b16 %v41
  %v200 = vunpack.c.h.b16 %v41
  %v201 = vunpack.c.l.b16 %v42
  %v202 = vunpack.c.h.b16 %v42
  %v203 = vunpack.c.l.b16 %v43
  %v204 = vunpack.c.h.b16 %v43
  %v205 = vunpack.c.l.b16 %v44
  %v206 = vunpack.c.h.b16 %v44
  %v207 = vunpack.c.l.b16 %v45
  %v208 = vunpack.c.h.b16 %v45
  %v209 = vunpack.c.l.b16 %v46
  %v210 = vunpack.c.h.b16 %v46
  %v211 = vunpack.c.l.b16 %v47
  %v212 = vunpack.c.h.b16 %v47
  %v213 = vunpack.c.l.b16 %v48
  %v214 = vunpack.c.h.b16 %v48
  %v215 = vunpack.c.l.b16 %v49
  %v216 = vunpack.c.h.b16 %v49
  %v217 = vunpack.c.l.b16 %v50
  %v218 = vunpack.c.h.b16 %v50
  %v219 = vpack.c.b16 %v189, %v187
  %v220 = vpack.c.b16 %v190, %v188
  %v221 = vpack.c.b16 %v193, %v191
  %v222 = vpack.c.b16 %v194, %v192
  %v223 = vpack.c.b16 %v197, %v195
  %v224 = vpack.c.b16 %v198, %v196
  %v225 = vpack.c.b16 %v201, %v199
  %v226 = vpack.c.b16 %v202, %v200
  %v227 = vpack.c.b16 %v205, %v203
  %v228 = vpack.c.b16 %v206, %v204
  %v229 = vpack.c.b16 %v209, %v207
  %v230 = vpack.c.b16 %v210, %v208
  %v231 = vpack.c.b16 %v213, %v211
  %v232 = vpack.c.b16 %v214, %v212
  %v233 = vpack.c.b16 %v217, %v215
  %v234 = vpack.c.b16 %v218, %v216
  %v363 = vunpack.c.l.b16 %v51
  %v364 = vunpack.c.h.b16 %v51
  %v365 = vunpack.c.l.b16 %v52
  %v366 = vunpack.c.h.b16 %v52
  %v367 = vunpack.c.l.b16 %v53
  %v368 = vunpack.c.h.b16 %v53
  %v369 = vunpack.c.l.b16 %v54
  %v370 = vunpack.c.h.b16 %v54
  %v371 = vunpack.c.l.b16 %v55
  %v372 = vunpack.c.l.b16 %v56
  %v373 = vunpack.c.h.b16 %v56
  %v374 = vunpack.c.l.b16 %v57
  %v375 = vunpack.c.h.b16 %v57
  %v376 = vunpack.c.l.b16 %v58
  %v377 = vunpack.c.h.b16 %v58
  %v378 = vunpack.c.l.b16 %v59
  %v379 = vunpack.c.h.b16 %v59
  %v380 = vunpack.c.l.b16 %v60
  %v381 = vunpack.c.l.b16 %v61
  %v382 = vunpack.c.h.b16 %v61
  %v383 = vunpack.c.l.b16 %v62
  %v384 = vunpack.c.h.b16 %v62
  %v385 = vunpack.c.l.b16 %v63
  %v386 = vunpack.c.h.b16 %v63
  %v387 = vunpack.c.l.b16 %v64
  %v388 = vunpack.c.h.b16 %v64
  %v389 = vunpack.c.l.b16 %v65
  %v390 = vunpack.c.l.b16 %v66
  %v391 = vunpack.c.h.b16 %v66
  %v392 = vunpack.c.l.b16 %v67
  %v393 = vunpack.c.h.b16 %v67
  %v394 = vunpack.c.l.b16 %v68
  %v395 = vunpack.c.h.b16 %v68
  %v396 = vunpack.c.l.b16 %v69
  %v397 = vunpack.c.h.b16 %v69
  %v398 = vunpack.c.l.b16 %v70
  %v399 = vunpack.c.l.b16 %v71
  %v400 = vunpack.c.h.b16 %v71
  %v401 = vunpack.c.l.b16 %v72
  %v402 = vunpack.c.h.b16 %v72
  %v403 = vunpack.c.l.b16 %v73
  %v404 = vunpack.c.h.b16 %v73
  %v405 = vunpack.c.l.b16 %v74
  %v406 = vunpack.c.h.b16 %v74
  %v407 = vunpack.c.l.b16 %v75
  %v408 = vunpack.c.l.b16 %v76
  %v409 = vunpack.c.h.b16 %v76
  %v410 = vunpack.c.l.b16 %v77
  %v411 = vunpack.c.h.b16 %v77
  %v412 = vunpack.c.l.b16 %v78
  %v413 = vunpack.c.h.b16 %v78
  %v414 = vunpack.c.l.b16 %v79
  %v415 = vunpack.c.h.b16 %v79
  %v416 = vunpack.c.l.b16 %v80
  %v417 = vunpack.c.l.b16 %v81
  %v418 = vunpack.c.h.b16 %v81
  %v419 = vunpack.c.l.b16 %v82
  %v420 = vunpack.c.h.b16 %v82
  %v421 = vunpack.c.l.b16 %v83
  %v422 = vunpack.c.h.b16 %v83
  %v423 = vunpack.c.l.b16 %v84
  %v424 = vunpack.c.h.b16 %v84
  %v425 = vunpack.c.l.b16 %v85
  %v426 = vunpack.c.l.b16 %v86
  %v427 = vunpack.c.h.b16 %v86
  %v428 = vunpack.c.l.b16 %v87
  %v429 = vunpack.c.h.b16 %v87
  %v430 = vunpack.c.l.b16 %v88
  %v431 = vunpack.c.h.b16 %v88
  %v432 = vunpack.c.l.b16 %v89
  %v433 = vunpack.c.h.b16 %v89
  %v434 = vunpack.c.l.b16 %v90
  %v435 = vunpack.c.l.b16 %v91
  %v436 = vunpack.c.h.b16 %v91
  %v437 = vunpack.c.l.b16 %v92
  %v438 = vunpack.c.h.b16 %v92
  %v439 = vunpack.c.l.b16 %v93
  %v440 = vunpack.c.h.b16 %v93
  %v441 = vunpack.c.l.b16 %v94
  %v442 = vunpack.c.h.b16 %v94
  %v443 = vunpack.c.l.b16 %v95
  %v444 = vunpack.c.l.b16 %v96
  %v445 = vunpack.c.h.b16 %v96
  %v446 = vunpack.c.l.b16 %v97
  %v447 = vunpack.c.h.b16 %v97
  %v448 = vunpack.c.l.b16 %v98
  %v449 = vunpack.c.h.b16 %v98
  %v450 = vunpack.c.l.b16 %v99
  %v451 = vunpack.c.h.b16 %v99
  %v452 = vunpack.c.l.b16 %v100
  %v453 = vunpack.c.l.b16 %v101
  %v454 = vunpack.c.h.b16 %v101
  %v455 = vunpack.c.l.b16 %v102
  %v456 = vunpack.c.h.b16 %v102
  %v457 = vunpack.c.l.b16 %v103
  %v458 = vunpack.c.h.b16 %v103
  %v459 = vunpack.c.l.b16 %v104
  %v460 = vunpack.c.h.b16 %v104
  %v461 = vunpack.c.l.b16 %v105
  %v462 = vunpack.c.l.b16 %v106
  %v463 = vunpack.c.h.b16 %v106
  %v464 = vunpack.c.l.b16 %v107
  %v465 = vunpack.c.h.b16 %v107
  %v466 = vunpack.c.l.b16 %v108
  %v467 = vunpack.c.h.b16 %v108
  %v468 = vunpack.c.l.b16 %v109
  %v469 = vunpack.c.h.b16 %v109
  %v470 = vunpack.c.l.b16 %v110
  %v471 = vunpack.c.l.b16 %v111
  %v472 = vunpack.c.h.b16 %v111
  %v473 = vunpack.c.l.b16 %v112
  %v474 = vunpack.c.h.b16 %v112
  %v475 = vunpack.c.l.b16 %v113
  %v476 = vunpack.c.h.b16 %v113
  %v477 = vunpack.c.l.b16 %v114
  %v478 = vunpack.c.h.b16 %v114
  %v479 = vunpack.c.l.b16 %v115
  %v480 = vunpack.c.l.b16 %v116
  %v481 = vunpack.c.h.b16 %v116
  %v482 = vunpack.c.l.b16 %v117
  %v483 = vunpack.c.h.b16 %v117
  %v484 = vunpack.c.l.b16 %v118
  %v485 = vunpack.c.h.b16 %v118
  %v486 = vunpack.c.l.b16 %v119
  %v487 = vunpack.c.h.b16 %v119
  %v488 = vunpack.c.l.b16 %v120
  %v489 = vunpack.c.l.b16 %v121
  %v490 = vunpack.c.h.b16 %v121
  %v491 = vunpack.c.l.b16 %v122
  %v492 = vunpack.c.h.b16 %v122
  %v493 = vunpack.c.l.b16 %v123
  %v494 = vunpack.c.h.b16 %v123
  %v495 = vunpack.c.l.b16 %v124
  %v496 = vunpack.c.h.b16 %v124
  %v497 = vunpack.c.l.b16 %v125
  %v498 = vunpack.c.l.b16 %v126
  %v499 = vunpack.c.h.b16 %v126
  %v500 = vunpack.c.l.b16 %v127
  %v501 = vunpack.c.h.b16 %v127
  %v502 = vunpack.c.l.b16 %v128
  %v503 = vunpack.c.h.b16 %v128
  %v504 = vunpack.c.l.b16 %v129
  %v505 = vunpack.c.h.b16 %v129
  %v506 = vunpack.c.l.b16 %v130
  %v507 = vunpack.c.l.b16 %v131
  %v508 = vunpack.c.h.b16 %v131
  %v509 = vunpack.c.l.b16 %v132
  %v510 = vunpack.c.h.b16 %v132
  %v511 = vunpack.c.l.b16 %v133
  %v512 = vunpack.c.h.b16 %v133
  %v513 = vunpack.c.l.b16 %v134
  %v514 = vunpack.c.h.b16 %v134
  %v515 = vunpack.c.l.b16 %v135
  %v516 = vunpack.c.l.b16 %v136
  %v517 = vunpack.c.h.b16 %v136
  %v518 = vunpack.c.l.b16 %v137
  %v519 = vunpack.c.h.b16 %v137
  %v520 = vunpack.c.l.b16 %v138
  %v521 = vunpack.c.h.b16 %v138
  %v522 = vunpack.c.l.b16 %v139
  %v523 = vunpack.c.h.b16 %v139
  %v524 = vunpack.c.l.b16 %v140
  %v525 = vunpack.c.l.b16 %v141
  %v526 = vunpack.c.h.b16 %v141
  %v527 = vunpack.c.l.b16 %v142
  %v528 = vunpack.c.h.b16 %v142
  %v529 = vunpack.c.l.b16 %v143
  %v530 = vunpack.c.h.b16 %v143
  %v531 = vunpack.c.l.b16 %v144
  %v532 = vunpack.c.h.b16 %v144
  %v533 = vunpack.c.l.b16 %v145
  %v534 = vunpack.c.l.b16 %v146
  %v535 = vunpack.c.h.b16 %v146
  %v536 = vunpack.c.l.b16 %v147
  %v537 = vunpack.c.h.b16 %v147
  %v538 = vunpack.c.l.b16 %v148
  %v539 = vunpack.c.h.b16 %v148
  %v540 = vunpack.c.l.b16 %v149
  %v541 = vunpack.c.h.b16 %v149
  %v542 = vunpack.c.l.b16 %v150
  %v543 = vunpack.c.l.b16 %v151
  %v544 = vunpack.c.h.b16 %v151
  %v545 = vunpack.c.l.b16 %v152
  %v546 = vunpack.c.h.b16 %v152
  %v547 = vunpack.c.l.b16 %v153
  %v548 = vunpack.c.h.b16 %v153
  %v549 = vunpack.c.l.b16 %v154
  %v550 = vunpack.c.h.b16 %v154
  %v551 = vunpack.c.l.b16 %v155
  %v552 = vunpack.c.l.b16 %v156
  %v553 = vunpack.c.h.b16 %v156
  %v554 = vunpack.c.l.b16 %v157
  %v555 = vunpack.c.h.b16 %v157
  %v556 = vunpack.c.l.b16 %v158
  %v557 = vunpack.c.h.b16 %v158
  %v558 = vunpack.c.l.b16 %v159
  %v559 = vunpack.c.h.b16 %v159
  %v560 = vunpack.c.l.b16 %v160
  %v561 = vunpack.c.l.b16 %v161
  %v562 = vunpack.c.h.b16 %v161
  %v563 = vunpack.c.l.b16 %v162
  %v564 = vunpack.c.h.b16 %v162
  %v565 = vunpack.c.l.b16 %v163
  %v566 = vunpack.c.h.b16 %v163
  %v567 = vunpack.c.l.b16 %v164
  %v568 = vunpack.c.h.b16 %v164
  %v569 = vunpack.c.l.b16 %v165
  %v570 = vunpack.c.l.b16 %v166
  %v571 = vunpack.c.h.b16 %v166
  %v572 = vunpack.c.l.b16 %v167
  %v573 = vunpack.c.h.b16 %v167
  %v574 = vunpack.c.l.b16 %v168
  %v575 = vunpack.c.h.b16 %v168
  %v576 = vunpack.c.l.b16 %v169
  %v577 = vunpack.c.h.b16 %v169
  %v578 = vunpack.c.l.b16 %v170
  %v579 = vpack.c.b16 %v372, %v363
  %v580 = vpack.c.b16 %v373, %v364
  %v581 = vpack.c.b16 %v374, %v365
  %v582 = vpack.c.b16 %v375, %v366
  %v583 = vpack.c.b16 %v376, %v367
  %v584 = vpack.c.b16 %v377, %v368
  %v585 = vpack.c.b16 %v378, %v369
  %v586 = vpack.c.b16 %v379, %v370
  %v587 = vpack.c.b16 %v380, %v371
  %v588 = vpack.c.b16 %v390, %v381
  %v589 = vpack.c.b16 %v391, %v382
  %v590 = vpack.c.b16 %v392, %v383
  %v591 = vpack.c.b16 %v393, %v384
  %v592 = vpack.c.b16 %v394, %v385
  %v593 = vpack.c.b16 %v395, %v386
  %v594 = vpack.c.b16 %v396, %v387
  %v595 = vpack.c.b16 %v397, %v388
  %v596 = vpack.c.b16 %v398, %v389
  %v597 = vpack.c.b16 %v408, %v399
  %v598 = vpack.c.b16 %v409, %v400
  %v599 = vpack.c.b16 %v410, %v401
  %v600 = vpack.c.b16 %v411, %v402
  %v601 = vpack.c.b16 %v412, %v403
  %v602 = vpack.c.b16 %v413, %v404
  %v603 = vpack.c.b16 %v414, %v405
  %v604 = vpack.c.b16 %v415, %v406
  %v605 = vpack.c.b16 %v416, %v407
  %v606 = vpack.c.b16 %v426, %v417
  %v607 = vpack.c.b16 %v427, %v418
  %v608 = vpack.c.b16 %v428, %v419
  %v609 = vpack.c.b16 %v429, %v420
  %v610 = vpack.c.b16 %v430, %v421
  %v611 = vpack.c.b16 %v431, %v422
  %v612 = vpack.c.b16 %v432, %v423
  %v613 = vpack.c.b16 %v433, %v424
  %v614 = vpack.c.b16 %v434, %v425
  %v615 = vpack.c.b16 %v444, %v435
  %v616 = vpack.c.b16 %v445, %v436
  %v617 = vpack.c.b16 %v446, %v437
  %v618 = vpack.c.b16 %v447, %v438
  %v619 = vpack.c.b16 %v448, %v439
  %v620 = vpack.c.b16 %v449, %v440
  %v621 = vpack.c.b16 %v450, %v441
  %v622 = vpack.c.b16 %v451, %v442
  %v623 = vpack.c.b16 %v452, %v443
  %v624 = vpack.c.b16 %v462, %v453
  %v625 = vpack.c.b16 %v463, %v454
  %v626 = vpack.c.b16 %v464, %v455
  %v627 = vpack.c.b16 %v465, %v456
  %v628 = vpack.c.b16 %v466, %v457
  %v629 = vpack.c.b16 %v467, %v458
  %v630 = vpack.c.b16 %v468, %v459
  %v631 = vpack.c.b16 %v469, %v460
  %v632 = vpack.c.b16 %v470, %v461
  %v633 = vpack.c.b16 %v480, %v471
  %v634 = vpack.c.b16 %v481, %v472
  %v635 = vpack.c.b16 %v482, %v473
  %v636 = vpack.c.b16 %v483, %v474
  %v637 = vpack.c.b16 %v484, %v475
  %v638 = vpack.c.b16 %v485, %v476
  %v639 = vpack.c.b16 %v486, %v477
  %v640 = vpack.c.b16 %v487, %v478
  %v641 = vpack.c.b16 %v488, %v479
  %v642 = vpack.c.b16 %v498, %v489
  %v643 = vpack.c.b16 %v499, %v490
  %v644 = vpack.c.b16 %v500, %v491
  %v645 = vpack.c.b16 %v501, %v492
  %v646 = vpack.c.b16 %v502, %v493
  %v647 = vpack.c.b16 %v503, %v494
  %v648 = vpack.c.b16 %v504, %v495
  %v649 = vpack.c.b16 %v505, %v496
  %v650 = vpack.c.b16 %v506, %v497
  %v651 = vpack.c.b16 %v516, %v507
  %v652 = vpack.c.b16 %v517, %v508
  %v653 = vpack.c.b16 %v518, %v509
  %v654 = vpack.c.b16 %v519, %v510
  %v655 = vpack.c.b16 %v520, %v511
  %v656 = vpack.c.b16 %v521, %v512
  %v657 = vpack.c.b16 %v522, %v513
  %v658 = vpack.c.b16 %v523, %v514
  %v659 = vpack.c.b16 %v524, %v515
  %v660 = vpack.c.b16 %v534, %v525
  %v661 = vpack.c.b16 %v535, %v526
  %v662 = vpack.c.b16 %v536, %v527
  %v663 = vpack.c.b16 %v537, %v528
  %v664 = vpack.c.b16 %v538, %v529
  %v665 = vpack.c.b16 %v539, %v530
  %v666 = vpack.c.b16 %v540, %v531
  %v667 = vpack.c.b16 %v541, %v532
  %v668 = vpack.c.b16 %v542, %v533
  %v669 = vpack.c.b16 %v552, %v543
  %v670 = vpack.c.b16 %v553, %v544
  %v671 = vpack.c.b16 %v554, %v545
  %v672 = vpack.c.b16 %v555, %v546
  %v673 = vpack.c.b16 %v556, %v547
  %v674 = vpack.c.b16 %v557, %v548
  %v675 = vpack.c.b16 %v558, %v549
  %v676 = vpack.c.b16 %v559, %v550
  %v677 = vpack.c.b16 %v560, %v551
  %v678 = vpack.c.b16 %v570, %v561
  %v679 = vpack.c.b16 %v571, %v562
  %v680 = vpack.c.b16 %v572, %v563
  %v681 = vpack.c.b16 %v573, %v564
  %v682 = vpack.c.b16 %v574, %v565
  %v683 = vpack.c.b16 %v575, %v566
  %v684 = vpack.c.b16 %v576, %v567
  %v685 = vpack.c.b16 %v577, %v568
  %v686 = vpack.c.b16 %v578, %v569
  %vm795 = vcmask 523264
  %v797 = vsel %vm795, %v220, 0
  %v800 = vsel %vm795, %v222, 0
  %v803 = vsel %vm795, %v224, 0
  %v806 = vsel %vm795, %v226, 0
  %v809 = vsel %vm795, %v228, 0
  %v812 = vsel %vm795, %v230, 0
  %v815 = vsel %vm795, %v232, 0
  %v818 = vsel %vm795, %v234, 0
  %820 = vmatprep.subr.bf16.mxu0 %v580
  %821 = vmatpush1.bf16.msra.mxu0 %v579
  %822 = vmatprep.subr.bf16.mxu0 %v589
  %823 = vmatpush1.bf16.msra.mxu0 %v588
  %824 = vmatprep.subr.bf16.mxu0 %v598
  %825 = vmatpush1.bf16.msra.mxu0 %v597
  %826 = vmatprep.subr.bf16.mxu0 %v607
  %827 = vmatpush1.bf16.msra.mxu0 %v606
  %828 = vmatprep.subr.bf16.mxu0 %v616
  %829 = vmatpush1.bf16.msra.mxu0 %v615
  %830 = vmatprep.subr.bf16.mxu0 %v625
  %831 = vmatpush1.bf16.msra.mxu0 %v624
  %832 = vmatprep.subr.bf16.mxu0 %v634
  %833 = vmatpush1.bf16.msra.mxu0 %v633
  %834 = vmatprep.subr.bf16.mxu0 %v643
  %835 = vmatpush1.bf16.msra.mxu0 %v642
  %836 = vmatprep.subr.bf16.mxu0 %v652
  %837 = vmatpush1.bf16.msra.mxu0 %v651
  %838 = vmatprep.subr.bf16.mxu0 %v661
  %839 = vmatpush1.bf16.msra.mxu0 %v660
  %840 = vmatprep.subr.bf16.mxu0 %v670
  %841 = vmatpush1.bf16.msra.mxu0 %v669
  %842 = vmatprep.subr.bf16.mxu0 %v679
  %843 = vmatpush1.bf16.msra.mxu0 %v678
  %844 = vmatprep.subr.bf16.mxu0 0
  %845 = vmatpush1.bf16.msra.mxu0 0
  %846 = vmatprep.subr.bf16.mxu0 0
  %847 = vmatpush1.bf16.msra.mxu0 0
  %848 = vmatprep.subr.bf16.mxu0 0
  %849 = vmatpush1.bf16.msra.mxu0 0
  %850 = vmatprep.subr.bf16.mxu0 0
  %851 = vmatpush1.bf16.msra.mxu0 0
  %852 = vmatprep.mubr.bf16.mxu0 %v797
  %853 = vmatmul.mubr.bf16.gmra.mrb[0].mxu0 %v219
  %v854 = vpop.f32.mrb[0].mxu0
  %v855 = vadd.f32 0.0, %v854
  %v856 = vpop.f32.mrb[0].mxu0
  %v857 = vadd.f32 0.0, %v856
  %v858 = vpop.f32.mrb[0].mxu0
  %v859 = vadd.f32 0.0, %v858
  %v860 = vpop.f32.mrb[0].mxu0
  %v861 = vadd.f32 0.0, %v860
  %862 = vmatprep.mubr.bf16.mxu0 %v800
  %863 = vmatmul.mubr.bf16.gmra.mrb[0].mxu0 %v221
  %v864 = vpop.f32.mrb[0].mxu0
  %v865 = vadd.f32 0.0, %v864
  %v866 = vpop.f32.mrb[0].mxu0
  %v867 = vadd.f32 0.0, %v866
  %v868 = vpop.f32.mrb[0].mxu0
  %v869 = vadd.f32 0.0, %v868
  %v870 = vpop.f32.mrb[0].mxu0
  %v871 = vadd.f32 0.0, %v870
  %872 = vmatprep.mubr.bf16.mxu0 %v803
  %873 = vmatmul.mubr.bf16.gmra.mrb[0].mxu0 %v223
  %v874 = vpop.f32.mrb[0].mxu0
  %v875 = vadd.f32 0.0, %v874
  %v876 = vpop.f32.mrb[0].mxu0
  %v877 = vadd.f32 0.0, %v876
  %v878 = vpop.f32.mrb[0].mxu0
  %v879 = vadd.f32 0.0, %v878
  %v880 = vpop.f32.mrb[0].mxu0
  %v881 = vadd.f32 0.0, %v880
  %882 = vmatprep.mubr.bf16.mxu0 %v806
  %883 = vmatmul.mubr.bf16.gmra.mrb[0].mxu0 %v225
  %v884 = vpop.f32.mrb[0].mxu0
  %v885 = vadd.f32 0.0, %v884
  %v886 = vpop.f32.mrb[0].mxu0
  %v887 = vadd.f32 0.0, %v886
  %v888 = vpop.f32.mrb[0].mxu0
  %v889 = vadd.f32 0.0, %v888
  %v890 = vpop.f32.mrb[0].mxu0
  %v891 = vadd.f32 0.0, %v890
  %892 = vmatprep.mubr.bf16.mxu0 %v809
  %893 = vmatmul.mubr.bf16.gmra.mrb[0].mxu0 %v227
  %v894 = vpop.f32.mrb[0].mxu0
  %v895 = vadd.f32 0.0, %v894
  %v896 = vpop.f32.mrb[0].mxu0
  %v897 = vadd.f32 0.0, %v896
  %v898 = vpop.f32.mrb[0].mxu0
  %v899 = vadd.f32 0.0, %v898
  %v900 = vpop.f32.mrb[0].mxu0
  %v901 = vadd.f32 0.0, %v900
  %902 = vmatprep.mubr.bf16.mxu0 %v812
  %903 = vmatmul.mubr.bf16.gmra.mrb[0].mxu0 %v229
  %v904 = vpop.f32.mrb[0].mxu0
  %v905 = vadd.f32 0.0, %v904
  %v906 = vpop.f32.mrb[0].mxu0
  %v907 = vadd.f32 0.0, %v906
  %v908 = vpop.f32.mrb[0].mxu0
  %v909 = vadd.f32 0.0, %v908
  %v910 = vpop.f32.mrb[0].mxu0
  %v911 = vadd.f32 0.0, %v910
  %912 = vmatprep.mubr.bf16.mxu0 %v815
  %913 = vmatmul.mubr.bf16.gmra.mrb[0].mxu0 %v231
  %v914 = vpop.f32.mrb[0].mxu0
  %v915 = vadd.f32 0.0, %v914
  %v916 = vpop.f32.mrb[0].mxu0
  %v917 = vadd.f32 0.0, %v916
  %v918 = vpop.f32.mrb[0].mxu0
  %v919 = vadd.f32 0.0, %v918
  %v920 = vpop.f32.mrb[0].mxu0
  %v921 = vadd.f32 0.0, %v920
  %922 = vmatprep.mubr.bf16.mxu0 %v818
  %923 = vmatmul.mubr.bf16.gmra.mrb[0].mxu0 %v233
  %v924 = vpop.f32.mrb[0].mxu0
  %v925 = vadd.f32 0.0, %v924
  %v926 = vpop.f32.mrb[0].mxu0
  %v927 = vadd.f32 0.0, %v926
  %v928 = vpop.f32.mrb[0].mxu0
  %v929 = vadd.f32 0.0, %v928
  %v930 = vpop.f32.mrb[0].mxu0
  %v931 = vadd.f32 0.0, %v930
  %932 = vdwg.mxu0
  %933 = vmatprep.subr.bf16.mxu0 %v582
  %934 = vmatpush1.bf16.msra.mxu0 %v581
  %935 = vmatprep.subr.bf16.mxu0 %v591
  %936 = vmatpush1.bf16.msra.mxu0 %v590
  %937 = vmatprep.subr.bf16.mxu0 %v600
  %938 = vmatpush1.bf16.msra.mxu0 %v599
  %939 = vmatprep.subr.bf16.mxu0 %v609
  %940 = vmatpush1.bf16.msra.mxu0 %v608
  %941 = vmatprep.subr.bf16.mxu0 %v618
  %942 = vmatpush1.bf16.msra.mxu0 %v617
  %943 = vmatprep.subr.bf16.mxu0 %v627
  %944 = vmatpush1.bf16.msra.mxu0 %v626
  %945 = vmatprep.subr.bf16.mxu0 %v636
  %946 = vmatpush1.bf16.msra.mxu0 %v635
  %947 = vmatprep.subr.bf16.mxu0 %v645
  %948 = vmatpush1.bf16.msra.mxu0 %v644
  %949 = vmatprep.subr.bf16.mxu0 %v654
  %950 = vmatpush1.bf16.msra.mxu0 %v653
  %951 = vmatprep.subr.bf16.mxu0 %v663
  %952 = vmatpush1.bf16.msra.mxu0 %v662
  %953 = vmatprep.subr.bf16.mxu0 %v672
  %954 = vmatpush1.bf16.msra.mxu0 %v671
  %955 = vmatprep.subr.bf16.mxu0 %v681
  %956 = vmatpush1.bf16.msra.mxu0 %v680
  %957 = vmatprep.subr.bf16.mxu0 0
  %958 = vmatpush1.bf16.msra.mxu0 0
  %959 = vmatprep.subr.bf16.mxu0 0
  %960 = vmatpush1.bf16.msra.mxu0 0
  %961 = vmatprep.subr.bf16.mxu0 0
  %962 = vmatpush1.bf16.msra.mxu0 0
  %963 = vmatprep.subr.bf16.mxu0 0
  %964 = vmatpush1.bf16.msra.mxu0 0
  %965 = vmatprep.mubr.bf16.mxu0 %v797
  %966 = vmatmul.mubr.bf16.gmra.mrb[0].mxu0 %v219
  %v967 = vpop.f32.mrb[0].mxu0
  %v968 = vadd.f32 0.0, %v967
  %v969 = vpop.f32.mrb[0].mxu0
  %v970 = vadd.f32 0.0, %v969
  %v971 = vpop.f32.mrb[0].mxu0
  %v972 = vadd.f32 0.0, %v971
  %v973 = vpop.f32.mrb[0].mxu0
  %v974 = vadd.f32 0.0, %v973
  %975 = vmatprep.mubr.bf16.mxu0 %v800
  %976 = vmatmul.mubr.bf16.gmra.mrb[0].mxu0 %v221
  %v977 = vpop.f32.mrb[0].mxu0
  %v978 = vadd.f32 0.0, %v977
  %v979 = vpop.f32.mrb[0].mxu0
  %v980 = vadd.f32 0.0, %v979
  %v981 = vpop.f32.mrb[0].mxu0
  %v982 = vadd.f32 0.0, %v981
  %v983 = vpop.f32.mrb[0].mxu0
  %v984 = vadd.f32 0.0, %v983
  %985 = vmatprep.mubr.bf16.mxu0 %v803
  %986 = vmatmul.mubr.bf16.gmra.mrb[0].mxu0 %v223
  %v987 = vpop.f32.mrb[0].mxu0
  %v988 = vadd.f32 0.0, %v987
  %v989 = vpop.f32.mrb[0].mxu0
  %v990 = vadd.f32 0.0, %v989
  %v991 = vpop.f32.mrb[0].mxu0
  %v992 = vadd.f32 0.0, %v991
  %v993 = vpop.f32.mrb[0].mxu0
  %v994 = vadd.f32 0.0, %v993
  %995 = vmatprep.mubr.bf16.mxu0 %v806
  %996 = vmatmul.mubr.bf16.gmra.mrb[0].mxu0 %v225
  %v997 = vpop.f32.mrb[0].mxu0
  %v998 = vadd.f32 0.0, %v997
  %v999 = vpop.f32.mrb[0].mxu0
  %v1000 = vadd.f32 0.0, %v999
  %v1001 = vpop.f32.mrb[0].mxu0
  %v1002 = vadd.f32 0.0, %v1001
  %v1003 = vpop.f32.mrb[0].mxu0
  %v1004 = vadd.f32 0.0, %v1003
  %1005 = vmatprep.mubr.bf16.mxu0 %v809
  %1006 = vmatmul.mubr.bf16.gmra.mrb[0].mxu0 %v227
  %v1007 = vpop.f32.mrb[0].mxu0
  %v1008 = vadd.f32 0.0, %v1007
  %v1009 = vpop.f32.mrb[0].mxu0
  %v1010 = vadd.f32 0.0, %v1009
  %v1011 = vpop.f32.mrb[0].mxu0
  %v1012 = vadd.f32 0.0, %v1011
  %v1013 = vpop.f32.mrb[0].mxu0
  %v1014 = vadd.f32 0.0, %v1013
  %1015 = vmatprep.mubr.bf16.mxu0 %v812
  %1016 = vmatmul.mubr.bf16.gmra.mrb[0].mxu0 %v229
  %v1017 = vpop.f32.mrb[0].mxu0
  %v1018 = vadd.f32 0.0, %v1017
  %v1019 = vpop.f32.mrb[0].mxu0
  %v1020 = vadd.f32 0.0, %v1019
  %v1021 = vpop.f32.mrb[0].mxu0
  %v1022 = vadd.f32 0.0, %v1021
  %v1023 = vpop.f32.mrb[0].mxu0
  %v1024 = vadd.f32 0.0, %v1023
  %1025 = vmatprep.mubr.bf16.mxu0 %v815
  %1026 = vmatmul.mubr.bf16.gmra.mrb[0].mxu0 %v231
  %v1027 = vpop.f32.mrb[0].mxu0
  %v1028 = vadd.f32 0.0, %v1027
  %v1029 = vpop.f32.mrb[0].mxu0
  %v1030 = vadd.f32 0.0, %v1029
  %v1031 = vpop.f32.mrb[0].mxu0
  %v1032 = vadd.f32 0.0, %v1031
  %v1033 = vpop.f32.mrb[0].mxu0
  %v1034 = vadd.f32 0.0, %v1033
  %1035 = vmatprep.mubr.bf16.mxu0 %v818
  %1036 = vmatmul.mubr.bf16.gmra.mrb[0].mxu0 %v233
  %v1037 = vpop.f32.mrb[0].mxu0
  %v1038 = vadd.f32 0.0, %v1037
  %v1039 = vpop.f32.mrb[0].mxu0
  %v1040 = vadd.f32 0.0, %v1039
  %v1041 = vpop.f32.mrb[0].mxu0
  %v1042 = vadd.f32 0.0, %v1041
  %v1043 = vpop.f32.mrb[0].mxu0
  %v1044 = vadd.f32 0.0, %v1043
  %1045 = vdwg.mxu0
  %1046 = vmatprep.subr.bf16.mxu0 %v584
  %1047 = vmatpush1.bf16.msra.mxu0 %v583
  %1048 = vmatprep.subr.bf16.mxu0 %v593
  %1049 = vmatpush1.bf16.msra.mxu0 %v592
  %1050 = vmatprep.subr.bf16.mxu0 %v602
  %1051 = vmatpush1.bf16.msra.mxu0 %v601
  %1052 = vmatprep.subr.bf16.mxu0 %v611
  %1053 = vmatpush1.bf16.msra.mxu0 %v610
  %1054 = vmatprep.subr.bf16.mxu0 %v620
  %1055 = vmatpush1.bf16.msra.mxu0 %v619
  %1056 = vmatprep.subr.bf16.mxu0 %v629
  %1057 = vmatpush1.bf16.msra.mxu0 %v628
  %1058 = vmatprep.subr.bf16.mxu0 %v638
  %1059 = vmatpush1.bf16.msra.mxu0 %v637
  %1060 = vmatprep.subr.bf16.mxu0 %v647
  %1061 = vmatpush1.bf16.msra.mxu0 %v646
  %1062 = vmatprep.subr.bf16.mxu0 %v656
  %1063 = vmatpush1.bf16.msra.mxu0 %v655
  %1064 = vmatprep.subr.bf16.mxu0 %v665
  %1065 = vmatpush1.bf16.msra.mxu0 %v664
  %1066 = vmatprep.subr.bf16.mxu0 %v674
  %1067 = vmatpush1.bf16.msra.mxu0 %v673
  %1068 = vmatprep.subr.bf16.mxu0 %v683
  %1069 = vmatpush1.bf16.msra.mxu0 %v682
  %1070 = vmatprep.subr.bf16.mxu0 0
  %1071 = vmatpush1.bf16.msra.mxu0 0
  %1072 = vmatprep.subr.bf16.mxu0 0
  %1073 = vmatpush1.bf16.msra.mxu0 0
  %1074 = vmatprep.subr.bf16.mxu0 0
  %1075 = vmatpush1.bf16.msra.mxu0 0
  %1076 = vmatprep.subr.bf16.mxu0 0
  %1077 = vmatpush1.bf16.msra.mxu0 0
  %1078 = vmatprep.mubr.bf16.mxu0 %v797
  %1079 = vmatmul.mubr.bf16.gmra.mrb[0].mxu0 %v219
  %v1080 = vpop.f32.mrb[0].mxu0
  %v1081 = vadd.f32 0.0, %v1080
  %v1082 = vpop.f32.mrb[0].mxu0
  %v1083 = vadd.f32 0.0, %v1082
  %v1084 = vpop.f32.mrb[0].mxu0
  %v1085 = vadd.f32 0.0, %v1084
  %v1086 = vpop.f32.mrb[0].mxu0
  %v1087 = vadd.f32 0.0, %v1086
  %1088 = vmatprep.mubr.bf16.mxu0 %v800
  %1089 = vmatmul.mubr.bf16.gmra.mrb[0].mxu0 %v221
  %v1090 = vpop.f32.mrb[0].mxu0
  %v1091 = vadd.f32 0.0, %v1090
  %v1092 = vpop.f32.mrb[0].mxu0
  %v1093 = vadd.f32 0.0, %v1092
  %v1094 = vpop.f32.mrb[0].mxu0
  %v1095 = vadd.f32 0.0, %v1094
  %v1096 = vpop.f32.mrb[0].mxu0
  %v1097 = vadd.f32 0.0, %v1096
  %1098 = vmatprep.mubr.bf16.mxu0 %v803
  %1099 = vmatmul.mubr.bf16.gmra.mrb[0].mxu0 %v223
  %v1100 = vpop.f32.mrb[0].mxu0
  %v1101 = vadd.f32 0.0, %v1100
  %v1102 = vpop.f32.mrb[0].mxu0
  %v1103 = vadd.f32 0.0, %v1102
  %v1104 = vpop.f32.mrb[0].mxu0
  %v1105 = vadd.f32 0.0, %v1104
  %v1106 = vpop.f32.mrb[0].mxu0
  %v1107 = vadd.f32 0.0, %v1106
  %1108 = vmatprep.mubr.bf16.mxu0 %v806
  %1109 = vmatmul.mubr.bf16.gmra.mrb[0].mxu0 %v225
  %v1110 = vpop.f32.mrb[0].mxu0
  %v1111 = vadd.f32 0.0, %v1110
  %v1112 = vpop.f32.mrb[0].mxu0
  %v1113 = vadd.f32 0.0, %v1112
  %v1114 = vpop.f32.mrb[0].mxu0
  %v1115 = vadd.f32 0.0, %v1114
  %v1116 = vpop.f32.mrb[0].mxu0
  %v1117 = vadd.f32 0.0, %v1116
  %1118 = vmatprep.mubr.bf16.mxu0 %v809
  %1119 = vmatmul.mubr.bf16.gmra.mrb[0].mxu0 %v227
  %v1120 = vpop.f32.mrb[0].mxu0
  %v1121 = vadd.f32 0.0, %v1120
  %v1122 = vpop.f32.mrb[0].mxu0
  %v1123 = vadd.f32 0.0, %v1122
  %v1124 = vpop.f32.mrb[0].mxu0
  %v1125 = vadd.f32 0.0, %v1124
  %v1126 = vpop.f32.mrb[0].mxu0
  %v1127 = vadd.f32 0.0, %v1126
  %1128 = vmatprep.mubr.bf16.mxu0 %v812
  %1129 = vmatmul.mubr.bf16.gmra.mrb[0].mxu0 %v229
  %v1130 = vpop.f32.mrb[0].mxu0
  %v1131 = vadd.f32 0.0, %v1130
  %v1132 = vpop.f32.mrb[0].mxu0
  %v1133 = vadd.f32 0.0, %v1132
  %v1134 = vpop.f32.mrb[0].mxu0
  %v1135 = vadd.f32 0.0, %v1134
  %v1136 = vpop.f32.mrb[0].mxu0
  %v1137 = vadd.f32 0.0, %v1136
  %1138 = vmatprep.mubr.bf16.mxu0 %v815
  %1139 = vmatmul.mubr.bf16.gmra.mrb[0].mxu0 %v231
  %v1140 = vpop.f32.mrb[0].mxu0
  %v1141 = vadd.f32 0.0, %v1140
  %v1142 = vpop.f32.mrb[0].mxu0
  %v1143 = vadd.f32 0.0, %v1142
  %v1144 = vpop.f32.mrb[0].mxu0
  %v1145 = vadd.f32 0.0, %v1144
  %v1146 = vpop.f32.mrb[0].mxu0
  %v1147 = vadd.f32 0.0, %v1146
  %1148 = vmatprep.mubr.bf16.mxu0 %v818
  %1149 = vmatmul.mubr.bf16.gmra.mrb[0].mxu0 %v233
  %v1150 = vpop.f32.mrb[0].mxu0
  %v1151 = vadd.f32 0.0, %v1150
  %v1152 = vpop.f32.mrb[0].mxu0
  %v1153 = vadd.f32 0.0, %v1152
  %v1154 = vpop.f32.mrb[0].mxu0
  %v1155 = vadd.f32 0.0, %v1154
  %v1156 = vpop.f32.mrb[0].mxu0
  %v1157 = vadd.f32 0.0, %v1156
  %1158 = vdwg.mxu0
  %1159 = vmatprep.subr.bf16.mxu0 %v586
  %1160 = vmatpush1.bf16.msra.mxu0 %v585
  %1161 = vmatprep.subr.bf16.mxu0 %v595
  %1162 = vmatpush1.bf16.msra.mxu0 %v594
  %1163 = vmatprep.subr.bf16.mxu0 %v604
  %1164 = vmatpush1.bf16.msra.mxu0 %v603
  %1165 = vmatprep.subr.bf16.mxu0 %v613
  %1166 = vmatpush1.bf16.msra.mxu0 %v612
  %1167 = vmatprep.subr.bf16.mxu0 %v622
  %1168 = vmatpush1.bf16.msra.mxu0 %v621
  %1169 = vmatprep.subr.bf16.mxu0 %v631
  %1170 = vmatpush1.bf16.msra.mxu0 %v630
  %1171 = vmatprep.subr.bf16.mxu0 %v640
  %1172 = vmatpush1.bf16.msra.mxu0 %v639
  %1173 = vmatprep.subr.bf16.mxu0 %v649
  %1174 = vmatpush1.bf16.msra.mxu0 %v648
  %1175 = vmatprep.subr.bf16.mxu0 %v658
  %1176 = vmatpush1.bf16.msra.mxu0 %v657
  %1177 = vmatprep.subr.bf16.mxu0 %v667
  %1178 = vmatpush1.bf16.msra.mxu0 %v666
  %1179 = vmatprep.subr.bf16.mxu0 %v676
  %1180 = vmatpush1.bf16.msra.mxu0 %v675
  %1181 = vmatprep.subr.bf16.mxu0 %v685
  %1182 = vmatpush1.bf16.msra.mxu0 %v684
  %1183 = vmatprep.subr.bf16.mxu0 0
  %1184 = vmatpush1.bf16.msra.mxu0 0
  %1185 = vmatprep.subr.bf16.mxu0 0
  %1186 = vmatpush1.bf16.msra.mxu0 0
  %1187 = vmatprep.subr.bf16.mxu0 0
  %1188 = vmatpush1.bf16.msra.mxu0 0
  %1189 = vmatprep.subr.bf16.mxu0 0
  %1190 = vmatpush1.bf16.msra.mxu0 0
  %1191 = vmatprep.mubr.bf16.mxu0 %v797
  %1192 = vmatmul.mubr.bf16.gmra.mrb[0].mxu0 %v219
  %v1193 = vpop.f32.mrb[0].mxu0
  %v1194 = vadd.f32 0.0, %v1193
  %v1195 = vpop.f32.mrb[0].mxu0
  %v1196 = vadd.f32 0.0, %v1195
  %v1197 = vpop.f32.mrb[0].mxu0
  %v1198 = vadd.f32 0.0, %v1197
  %v1199 = vpop.f32.mrb[0].mxu0
  %v1200 = vadd.f32 0.0, %v1199
  %1201 = vmatprep.mubr.bf16.mxu0 %v800
  %1202 = vmatmul.mubr.bf16.gmra.mrb[0].mxu0 %v221
  %v1203 = vpop.f32.mrb[0].mxu0
  %v1204 = vadd.f32 0.0, %v1203
  %v1205 = vpop.f32.mrb[0].mxu0
  %v1206 = vadd.f32 0.0, %v1205
  %v1207 = vpop.f32.mrb[0].mxu0
  %v1208 = vadd.f32 0.0, %v1207
  %v1209 = vpop.f32.mrb[0].mxu0
  %v1210 = vadd.f32 0.0, %v1209
  %1211 = vmatprep.mubr.bf16.mxu0 %v803
  %1212 = vmatmul.mubr.bf16.gmra.mrb[0].mxu0 %v223
  %v1213 = vpop.f32.mrb[0].mxu0
  %v1214 = vadd.f32 0.0, %v1213
  %v1215 = vpop.f32.mrb[0].mxu0
  %v1216 = vadd.f32 0.0, %v1215
  %v1217 = vpop.f32.mrb[0].mxu0
  %v1218 = vadd.f32 0.0, %v1217
  %v1219 = vpop.f32.mrb[0].mxu0
  %v1220 = vadd.f32 0.0, %v1219
  %1221 = vmatprep.mubr.bf16.mxu0 %v806
  %1222 = vmatmul.mubr.bf16.gmra.mrb[0].mxu0 %v225
  %v1223 = vpop.f32.mrb[0].mxu0
  %v1224 = vadd.f32 0.0, %v1223
  %v1225 = vpop.f32.mrb[0].mxu0
  %v1226 = vadd.f32 0.0, %v1225
  %v1227 = vpop.f32.mrb[0].mxu0
  %v1228 = vadd.f32 0.0, %v1227
  %v1229 = vpop.f32.mrb[0].mxu0
  %v1230 = vadd.f32 0.0, %v1229
  %1231 = vmatprep.mubr.bf16.mxu0 %v809
  %1232 = vmatmul.mubr.bf16.gmra.mrb[0].mxu0 %v227
  %v1233 = vpop.f32.mrb[0].mxu0
  %v1234 = vadd.f32 0.0, %v1233
  %v1235 = vpop.f32.mrb[0].mxu0
  %v1236 = vadd.f32 0.0, %v1235
  %v1237 = vpop.f32.mrb[0].mxu0
  %v1238 = vadd.f32 0.0, %v1237
  %v1239 = vpop.f32.mrb[0].mxu0
  %v1240 = vadd.f32 0.0, %v1239
  %1241 = vmatprep.mubr.bf16.mxu0 %v812
  %1242 = vmatmul.mubr.bf16.gmra.mrb[0].mxu0 %v229
  %v1243 = vpop.f32.mrb[0].mxu0
  %v1244 = vadd.f32 0.0, %v1243
  %v1245 = vpop.f32.mrb[0].mxu0
  %v1246 = vadd.f32 0.0, %v1245
  %v1247 = vpop.f32.mrb[0].mxu0
  %v1248 = vadd.f32 0.0, %v1247
  %v1249 = vpop.f32.mrb[0].mxu0
  %v1250 = vadd.f32 0.0, %v1249
  %1251 = vmatprep.mubr.bf16.mxu0 %v815
  %1252 = vmatmul.mubr.bf16.gmra.mrb[0].mxu0 %v231
  %v1253 = vpop.f32.mrb[0].mxu0
  %v1254 = vadd.f32 0.0, %v1253
  %v1255 = vpop.f32.mrb[0].mxu0
  %v1256 = vadd.f32 0.0, %v1255
  %v1257 = vpop.f32.mrb[0].mxu0
  %v1258 = vadd.f32 0.0, %v1257
  %v1259 = vpop.f32.mrb[0].mxu0
  %v1260 = vadd.f32 0.0, %v1259
  %1261 = vmatprep.mubr.bf16.mxu0 %v818
  %1262 = vmatmul.mubr.bf16.gmra.mrb[0].mxu0 %v233
  %v1263 = vpop.f32.mrb[0].mxu0
  %v1264 = vadd.f32 0.0, %v1263
  %v1265 = vpop.f32.mrb[0].mxu0
  %v1266 = vadd.f32 0.0, %v1265
  %v1267 = vpop.f32.mrb[0].mxu0
  %v1268 = vadd.f32 0.0, %v1267
  %v1269 = vpop.f32.mrb[0].mxu0
  %v1270 = vadd.f32 0.0, %v1269
  %1271 = vdwg.mxu0
  %1272 = vmatprep.subr.bf16.mxu0 0
  %1273 = vmatpush1.bf16.msra.mxu0 %v587
  %1274 = vmatprep.subr.bf16.mxu0 0
  %1275 = vmatpush1.bf16.msra.mxu0 %v596
  %1276 = vmatprep.subr.bf16.mxu0 0
  %1277 = vmatpush1.bf16.msra.mxu0 %v605
  %1278 = vmatprep.subr.bf16.mxu0 0
  %1279 = vmatpush1.bf16.msra.mxu0 %v614
  %1280 = vmatprep.subr.bf16.mxu0 0
  %1281 = vmatpush1.bf16.msra.mxu0 %v623
  %1282 = vmatprep.subr.bf16.mxu0 0
  %1283 = vmatpush1.bf16.msra.mxu0 %v632
  %1284 = vmatprep.subr.bf16.mxu0 0
  %1285 = vmatpush1.bf16.msra.mxu0 %v641
  %1286 = vmatprep.subr.bf16.mxu0 0
  %1287 = vmatpush1.bf16.msra.mxu0 %v650
  %1288 = vmatprep.subr.bf16.mxu0 0
  %1289 = vmatpush1.bf16.msra.mxu0 %v659
  %1290 = vmatprep.subr.bf16.mxu0 0
  %1291 = vmatpush1.bf16.msra.mxu0 %v668
  %1292 = vmatprep.subr.bf16.mxu0 0
  %1293 = vmatpush1.bf16.msra.mxu0 %v677
  %1294 = vmatprep.subr.bf16.mxu0 0
  %1295 = vmatpush1.bf16.msra.mxu0 %v686
  %1296 = vmatprep.subr.bf16.mxu0 0
  %1297 = vmatpush1.bf16.msra.mxu0 0
  %1298 = vmatprep.subr.bf16.mxu0 0
  %1299 = vmatpush1.bf16.msra.mxu0 0
  %1300 = vmatprep.subr.bf16.mxu0 0
  %1301 = vmatpush1.bf16.msra.mxu0 0
  %1302 = vmatprep.subr.bf16.mxu0 0
  %1303 = vmatpush1.bf16.msra.mxu0 0
  %1304 = vmatprep.mubr.bf16.mxu0 %v797
  %1305 = vmatmul.mubr.bf16.gmra.mrb[0].mxu0 %v219
  %v1306 = vpop.f32.mrb[0].mxu0
  %v1307 = vadd.f32 0.0, %v1306
  %v1308 = vpop.f32.mrb[0].mxu0
  %v1309 = vpop.f32.mrb[0].mxu0
  %v1310 = vadd.f32 0.0, %v1309
  %v1311 = vpop.f32.mrb[0].mxu0
  %1312 = vmatprep.mubr.bf16.mxu0 %v800
  %1313 = vmatmul.mubr.bf16.gmra.mrb[0].mxu0 %v221
  %v1314 = vpop.f32.mrb[0].mxu0
  %v1315 = vadd.f32 0.0, %v1314
  %v1316 = vpop.f32.mrb[0].mxu0
  %v1317 = vpop.f32.mrb[0].mxu0
  %v1318 = vadd.f32 0.0, %v1317
  %v1319 = vpop.f32.mrb[0].mxu0
  %1320 = vmatprep.mubr.bf16.mxu0 %v803
  %1321 = vmatmul.mubr.bf16.gmra.mrb[0].mxu0 %v223
  %v1322 = vpop.f32.mrb[0].mxu0
  %v1323 = vadd.f32 0.0, %v1322
  %v1324 = vpop.f32.mrb[0].mxu0
  %v1325 = vpop.f32.mrb[0].mxu0
  %v1326 = vadd.f32 0.0, %v1325
  %v1327 = vpop.f32.mrb[0].mxu0
  %1328 = vmatprep.mubr.bf16.mxu0 %v806
  %1329 = vmatmul.mubr.bf16.gmra.mrb[0].mxu0 %v225
  %v1330 = vpop.f32.mrb[0].mxu0
  %v1331 = vadd.f32 0.0, %v1330
  %v1332 = vpop.f32.mrb[0].mxu0
  %v1333 = vpop.f32.mrb[0].mxu0
  %v1334 = vadd.f32 0.0, %v1333
  %v1335 = vpop.f32.mrb[0].mxu0
  %1336 = vmatprep.mubr.bf16.mxu0 %v809
  %1337 = vmatmul.mubr.bf16.gmra.mrb[0].mxu0 %v227
  %v1338 = vpop.f32.mrb[0].mxu0
  %v1339 = vadd.f32 0.0, %v1338
  %v1340 = vpop.f32.mrb[0].mxu0
  %v1341 = vpop.f32.mrb[0].mxu0
  %v1342 = vadd.f32 0.0, %v1341
  %v1343 = vpop.f32.mrb[0].mxu0
  %1344 = vmatprep.mubr.bf16.mxu0 %v812
  %1345 = vmatmul.mubr.bf16.gmra.mrb[0].mxu0 %v229
  %v1346 = vpop.f32.mrb[0].mxu0
  %v1347 = vadd.f32 0.0, %v1346
  %v1348 = vpop.f32.mrb[0].mxu0
  %v1349 = vpop.f32.mrb[0].mxu0
  %v1350 = vadd.f32 0.0, %v1349
  %v1351 = vpop.f32.mrb[0].mxu0
  %1352 = vmatprep.mubr.bf16.mxu0 %v815
  %1353 = vmatmul.mubr.bf16.gmra.mrb[0].mxu0 %v231
  %v1354 = vpop.f32.mrb[0].mxu0
  %v1355 = vadd.f32 0.0, %v1354
  %v1356 = vpop.f32.mrb[0].mxu0
  %v1357 = vpop.f32.mrb[0].mxu0
  %v1358 = vadd.f32 0.0, %v1357
  %v1359 = vpop.f32.mrb[0].mxu0
  %1360 = vmatprep.mubr.bf16.mxu0 %v818
  %1361 = vmatmul.mubr.bf16.gmra.mrb[0].mxu0 %v233
  %v1362 = vpop.f32.mrb[0].mxu0
  %v1363 = vadd.f32 0.0, %v1362
  %v1364 = vpop.f32.mrb[0].mxu0
  %v1365 = vpop.f32.mrb[0].mxu0
  %v1366 = vadd.f32 0.0, %v1365
  %v1367 = vpop.f32.mrb[0].mxu0
  %1368 = vdwg.mxu0
  %vm1417 = vcmask 1046528
  %v1418 = vrot.slane %v970, 1
  %v1419 = vrot.slane %v974, 1
  %v1420 = vsel %vm1417, %v1418, %v1419
  %v1421 = vrot.slane %v1081, 1
  %v1422 = vrot.slane %v1085, 1
  %v1423 = vsel %vm1417, %v1421, %v1422
  %v1424 = vrot.slane %v1083, 1
  %v1425 = vrot.slane %v1087, 1
  %v1426 = vsel %vm1417, %v1424, %v1425
  %v1427 = vrot.slane %v980, 1
  %v1428 = vrot.slane %v984, 1
  %v1429 = vsel %vm1417, %v1427, %v1428
  %v1430 = vrot.slane %v1091, 1
  %v1431 = vrot.slane %v1095, 1
  %v1432 = vsel %vm1417, %v1430, %v1431
  %v1433 = vrot.slane %v1093, 1
  %v1434 = vrot.slane %v1097, 1
  %v1435 = vsel %vm1417, %v1433, %v1434
  %v1436 = vrot.slane %v990, 1
  %v1437 = vrot.slane %v994, 1
  %v1438 = vsel %vm1417, %v1436, %v1437
  %v1439 = vrot.slane %v1101, 1
  %v1440 = vrot.slane %v1105, 1
  %v1441 = vsel %vm1417, %v1439, %v1440
  %v1442 = vrot.slane %v1103, 1
  %v1443 = vrot.slane %v1107, 1
  %v1444 = vsel %vm1417, %v1442, %v1443
  %v1445 = vrot.slane %v1000, 1
  %v1446 = vrot.slane %v1004, 1
  %v1447 = vsel %vm1417, %v1445, %v1446
  %v1448 = vrot.slane %v1111, 1
  %v1449 = vrot.slane %v1115, 1
  %v1450 = vsel %vm1417, %v1448, %v1449
  %v1451 = vrot.slane %v1113, 1
  %v1452 = vrot.slane %v1117, 1
  %v1453 = vsel %vm1417, %v1451, %v1452
  %v1454 = vrot.slane %v1010, 1
  %v1455 = vrot.slane %v1014, 1
  %v1456 = vsel %vm1417, %v1454, %v1455
  %v1457 = vrot.slane %v1121, 1
  %v1458 = vrot.slane %v1125, 1
  %v1459 = vsel %vm1417, %v1457, %v1458
  %v1460 = vrot.slane %v1123, 1
  %v1461 = vrot.slane %v1127, 1
  %v1462 = vsel %vm1417, %v1460, %v1461
  %v1463 = vrot.slane %v1020, 1
  %v1464 = vrot.slane %v1024, 1
  %v1465 = vsel %vm1417, %v1463, %v1464
  %v1466 = vrot.slane %v1131, 1
  %v1467 = vrot.slane %v1135, 1
  %v1468 = vsel %vm1417, %v1466, %v1467
  %v1469 = vrot.slane %v1133, 1
  %v1470 = vrot.slane %v1137, 1
  %v1471 = vsel %vm1417, %v1469, %v1470
  %v1472 = vrot.slane %v1030, 1
  %v1473 = vrot.slane %v1034, 1
  %v1474 = vsel %vm1417, %v1472, %v1473
  %v1475 = vrot.slane %v1141, 1
  %v1476 = vrot.slane %v1145, 1
  %v1477 = vsel %vm1417, %v1475, %v1476
  %v1478 = vrot.slane %v1143, 1
  %v1479 = vrot.slane %v1147, 1
  %v1480 = vsel %vm1417, %v1478, %v1479
  %v1481 = vrot.slane %v1040, 1
  %v1482 = vrot.slane %v1044, 1
  %v1483 = vsel %vm1417, %v1481, %v1482
  %v1484 = vrot.slane %v1151, 1
  %v1485 = vrot.slane %v1155, 1
  %v1486 = vsel %vm1417, %v1484, %v1485
  %v1487 = vrot.slane %v1153, 1
  %v1488 = vrot.slane %v1157, 1
  %v1489 = vsel %vm1417, %v1487, %v1488
  %v1538 = vadd.f32 %v855, %v1420
  %v1539 = vadd.f32 %v857, %v1423
  %v1540 = vadd.f32 %v968, %v1426
  %v1541 = vadd.f32 %v859, %v1419
  %v1542 = vadd.f32 %v861, %v1422
  %v1543 = vadd.f32 %v972, %v1425
  %v1544 = vadd.f32 %v865, %v1429
  %v1545 = vadd.f32 %v867, %v1432
  %v1546 = vadd.f32 %v978, %v1435
  %v1547 = vadd.f32 %v869, %v1428
  %v1548 = vadd.f32 %v871, %v1431
  %v1549 = vadd.f32 %v982, %v1434
  %v1550 = vadd.f32 %v875, %v1438
  %v1551 = vadd.f32 %v877, %v1441
  %v1552 = vadd.f32 %v988, %v1444
  %v1553 = vadd.f32 %v879, %v1437
  %v1554 = vadd.f32 %v881, %v1440
  %v1555 = vadd.f32 %v992, %v1443
  %v1556 = vadd.f32 %v885, %v1447
  %v1557 = vadd.f32 %v887, %v1450
  %v1558 = vadd.f32 %v998, %v1453
  %v1559 = vadd.f32 %v889, %v1446
  %v1560 = vadd.f32 %v891, %v1449
  %v1561 = vadd.f32 %v1002, %v1452
  %v1562 = vadd.f32 %v895, %v1456
  %v1563 = vadd.f32 %v897, %v1459
  %v1564 = vadd.f32 %v1008, %v1462
  %v1565 = vadd.f32 %v899, %v1455
  %v1566 = vadd.f32 %v901, %v1458
  %v1567 = vadd.f32 %v1012, %v1461
  %v1568 = vadd.f32 %v905, %v1465
  %v1569 = vadd.f32 %v907, %v1468
  %v1570 = vadd.f32 %v1018, %v1471
  %v1571 = vadd.f32 %v909, %v1464
  %v1572 = vadd.f32 %v911, %v1467
  %v1573 = vadd.f32 %v1022, %v1470
  %v1574 = vadd.f32 %v915, %v1474
  %v1575 = vadd.f32 %v917, %v1477
  %v1576 = vadd.f32 %v1028, %v1480
  %v1577 = vadd.f32 %v919, %v1473
  %v1578 = vadd.f32 %v921, %v1476
  %v1579 = vadd.f32 %v1032, %v1479
  %v1580 = vadd.f32 %v925, %v1483
  %v1581 = vadd.f32 %v927, %v1486
  %v1582 = vadd.f32 %v1038, %v1489
  %v1583 = vadd.f32 %v929, %v1482
  %v1584 = vadd.f32 %v931, %v1485
  %v1585 = vadd.f32 %v1042, %v1488
  %vm1634 = vcmask 1045504
  %v1635 = vrot.slane %v1194, 2
  %v1636 = vrot.slane %v1198, 2
  %v1637 = vsel %vm1634, %v1635, %v1636
  %v1638 = vrot.slane %v1196, 2
  %v1639 = vrot.slane %v1200, 2
  %v1640 = vsel %vm1634, %v1638, %v1639
  %v1641 = vrot.slane %v1307, 2
  %v1642 = vrot.slane %v1310, 2
  %v1643 = vsel %vm1634, %v1641, %v1642
  %v1644 = vrot.slane %v1204, 2
  %v1645 = vrot.slane %v1208, 2
  %v1646 = vsel %vm1634, %v1644, %v1645
  %v1647 = vrot.slane %v1206, 2
  %v1648 = vrot.slane %v1210, 2
  %v1649 = vsel %vm1634, %v1647, %v1648
  %v1650 = vrot.slane %v1315, 2
  %v1651 = vrot.slane %v1318, 2
  %v1652 = vsel %vm1634, %v1650, %v1651
  %v1653 = vrot.slane %v1214, 2
  %v1654 = vrot.slane %v1218, 2
  %v1655 = vsel %vm1634, %v1653, %v1654
  %v1656 = vrot.slane %v1216, 2
  %v1657 = vrot.slane %v1220, 2
  %v1658 = vsel %vm1634, %v1656, %v1657
  %v1659 = vrot.slane %v1323, 2
  %v1660 = vrot.slane %v1326, 2
  %v1661 = vsel %vm1634, %v1659, %v1660
  %v1662 = vrot.slane %v1224, 2
  %v1663 = vrot.slane %v1228, 2
  %v1664 = vsel %vm1634, %v1662, %v1663
  %v1665 = vrot.slane %v1226, 2
  %v1666 = vrot.slane %v1230, 2
  %v1667 = vsel %vm1634, %v1665, %v1666
  %v1668 = vrot.slane %v1331, 2
  %v1669 = vrot.slane %v1334, 2
  %v1670 = vsel %vm1634, %v1668, %v1669
  %v1671 = vrot.slane %v1234, 2
  %v1672 = vrot.slane %v1238, 2
  %v1673 = vsel %vm1634, %v1671, %v1672
  %v1674 = vrot.slane %v1236, 2
  %v1675 = vrot.slane %v1240, 2
  %v1676 = vsel %vm1634, %v1674, %v1675
  %v1677 = vrot.slane %v1339, 2
  %v1678 = vrot.slane %v1342, 2
  %v1679 = vsel %vm1634, %v1677, %v1678
  %v1680 = vrot.slane %v1244, 2
  %v1681 = vrot.slane %v1248, 2
  %v1682 = vsel %vm1634, %v1680, %v1681
  %v1683 = vrot.slane %v1246, 2
  %v1684 = vrot.slane %v1250, 2
  %v1685 = vsel %vm1634, %v1683, %v1684
  %v1686 = vrot.slane %v1347, 2
  %v1687 = vrot.slane %v1350, 2
  %v1688 = vsel %vm1634, %v1686, %v1687
  %v1689 = vrot.slane %v1254, 2
  %v1690 = vrot.slane %v1258, 2
  %v1691 = vsel %vm1634, %v1689, %v1690
  %v1692 = vrot.slane %v1256, 2
  %v1693 = vrot.slane %v1260, 2
  %v1694 = vsel %vm1634, %v1692, %v1693
  %v1695 = vrot.slane %v1355, 2
  %v1696 = vrot.slane %v1358, 2
  %v1697 = vsel %vm1634, %v1695, %v1696
  %v1698 = vrot.slane %v1264, 2
  %v1699 = vrot.slane %v1268, 2
  %v1700 = vsel %vm1634, %v1698, %v1699
  %v1701 = vrot.slane %v1266, 2
  %v1702 = vrot.slane %v1270, 2
  %v1703 = vsel %vm1634, %v1701, %v1702
  %v1704 = vrot.slane %v1363, 2
  %v1705 = vrot.slane %v1366, 2
  %v1706 = vsel %vm1634, %v1704, %v1705
  %v1755 = vadd.f32 %v1538, %v1637
  %v1756 = vadd.f32 %v1539, %v1640
  %v1757 = vadd.f32 %v1540, %v1643
  %v1758 = vadd.f32 %v1541, %v1636
  %v1759 = vadd.f32 %v1542, %v1639
  %v1760 = vadd.f32 %v1543, %v1642
  %v1761 = vadd.f32 %v1544, %v1646
  %v1762 = vadd.f32 %v1545, %v1649
  %v1763 = vadd.f32 %v1546, %v1652
  %v1764 = vadd.f32 %v1547, %v1645
  %v1765 = vadd.f32 %v1548, %v1648
  %v1766 = vadd.f32 %v1549, %v1651
  %v1767 = vadd.f32 %v1550, %v1655
  %v1768 = vadd.f32 %v1551, %v1658
  %v1769 = vadd.f32 %v1552, %v1661
  %v1770 = vadd.f32 %v1553, %v1654
  %v1771 = vadd.f32 %v1554, %v1657
  %v1772 = vadd.f32 %v1555, %v1660
  %v1773 = vadd.f32 %v1556, %v1664
  %v1774 = vadd.f32 %v1557, %v1667
  %v1775 = vadd.f32 %v1558, %v1670
  %v1776 = vadd.f32 %v1559, %v1663
  %v1777 = vadd.f32 %v1560, %v1666
  %v1778 = vadd.f32 %v1561, %v1669
  %v1779 = vadd.f32 %v1562, %v1673
  %v1780 = vadd.f32 %v1563, %v1676
  %v1781 = vadd.f32 %v1564, %v1679
  %v1782 = vadd.f32 %v1565, %v1672
  %v1783 = vadd.f32 %v1566, %v1675
  %v1784 = vadd.f32 %v1567, %v1678
  %v1785 = vadd.f32 %v1568, %v1682
  %v1786 = vadd.f32 %v1569, %v1685
  %v1787 = vadd.f32 %v1570, %v1688
  %v1788 = vadd.f32 %v1571, %v1681
  %v1789 = vadd.f32 %v1572, %v1684
  %v1790 = vadd.f32 %v1573, %v1687
  %v1791 = vadd.f32 %v1574, %v1691
  %v1792 = vadd.f32 %v1575, %v1694
  %v1793 = vadd.f32 %v1576, %v1697
  %v1794 = vadd.f32 %v1577, %v1690
  %v1795 = vadd.f32 %v1578, %v1693
  %v1796 = vadd.f32 %v1579, %v1696
  %v1797 = vadd.f32 %v1580, %v1700
  %v1798 = vadd.f32 %v1581, %v1703
  %v1799 = vadd.f32 %v1582, %v1706
  %v1800 = vadd.f32 %v1583, %v1699
  %v1801 = vadd.f32 %v1584, %v1702
  %v1802 = vadd.f32 %v1585, %v1705
  %v1803 = vld [vmem:[%s3] sm:$0x7]
  %v1805 = vlaneseq
  %v1806 = vshrl.u32 %v1805, 7
  %v1807 = vsub.s32 0, %v1806
  %v1808 = vrot.slane %v1803, %v1807
  %v1809 = vlaneseq
  %v1810 = vshrl.u32 %v1809, 7
  %v1811 = vsub.s32 1, %v1810
  %v1812 = vrot.slane %v1803, %v1811
  %v1813 = vlaneseq
  %v1814 = vshrl.u32 %v1813, 7
  %v1815 = vsub.s32 2, %v1814
  %v1816 = vrot.slane %v1803, %v1815
  %v1820 = vadd.f32 %v1755, %v1808
  %v1821 = vadd.f32 %v1756, %v1812
  %v1822 = vadd.f32 %v1757, %v1816
  %v1823 = vadd.f32 %v1758, %v1808
  %v1824 = vadd.f32 %v1759, %v1812
  %v1825 = vadd.f32 %v1760, %v1816
  %v1826 = vadd.f32 %v1761, %v1808
  %v1827 = vadd.f32 %v1762, %v1812
  %v1828 = vadd.f32 %v1763, %v1816
  %v1829 = vadd.f32 %v1764, %v1808
  %v1830 = vadd.f32 %v1765, %v1812
  %v1831 = vadd.f32 %v1766, %v1816
  %v1832 = vadd.f32 %v1767, %v1808
  %v1833 = vadd.f32 %v1768, %v1812
  %v1834 = vadd.f32 %v1769, %v1816
  %v1835 = vadd.f32 %v1770, %v1808
  %v1836 = vadd.f32 %v1771, %v1812
  %v1837 = vadd.f32 %v1772, %v1816
  %v1838 = vadd.f32 %v1773, %v1808
  %v1839 = vadd.f32 %v1774, %v1812
  %v1840 = vadd.f32 %v1775, %v1816
  %v1841 = vadd.f32 %v1776, %v1808
  %v1842 = vadd.f32 %v1777, %v1812
  %v1843 = vadd.f32 %v1778, %v1816
  %v1844 = vadd.f32 %v1779, %v1808
  %v1845 = vadd.f32 %v1780, %v1812
  %v1846 = vadd.f32 %v1781, %v1816
  %v1847 = vadd.f32 %v1782, %v1808
  %v1848 = vadd.f32 %v1783, %v1812
  %v1849 = vadd.f32 %v1784, %v1816
  %v1850 = vadd.f32 %v1785, %v1808
  %v1851 = vadd.f32 %v1786, %v1812
  %v1852 = vadd.f32 %v1787, %v1816
  %v1853 = vadd.f32 %v1788, %v1808
  %v1854 = vadd.f32 %v1789, %v1812
  %v1855 = vadd.f32 %v1790, %v1816
  %v1856 = vadd.f32 %v1791, %v1808
  %v1857 = vadd.f32 %v1792, %v1812
  %v1858 = vadd.f32 %v1793, %v1816
  %v1859 = vadd.f32 %v1794, %v1808
  %v1860 = vadd.f32 %v1795, %v1812
  %v1861 = vadd.f32 %v1796, %v1816
  %v1862 = vadd.f32 %v1797, %v1808
  %v1863 = vadd.f32 %v1798, %v1812
  %v1864 = vadd.f32 %v1799, %v1816
  %v1865 = vadd.f32 %v1800, %v1808
  %v1866 = vadd.f32 %v1801, %v1812
  %v1867 = vadd.f32 %v1802, %v1816
  %v1868 = vmax.f32 %v1820, 0.0
  %v1869 = vmax.f32 %v1821, 0.0
  %v1870 = vmax.f32 %v1822, 0.0
  %v1871 = vmax.f32 %v1823, 0.0
  %v1872 = vmax.f32 %v1824, 0.0
  %v1873 = vmax.f32 %v1825, 0.0
  %v1874 = vmax.f32 %v1826, 0.0
  %v1875 = vmax.f32 %v1827, 0.0
  %v1876 = vmax.f32 %v1828, 0.0
  %v1877 = vmax.f32 %v1829, 0.0
  %v1878 = vmax.f32 %v1830, 0.0
  %v1879 = vmax.f32 %v1831, 0.0
  %v1880 = vmax.f32 %v1832, 0.0
  %v1881 = vmax.f32 %v1833, 0.0
  %v1882 = vmax.f32 %v1834, 0.0
  %v1883 = vmax.f32 %v1835, 0.0
  %v1884 = vmax.f32 %v1836, 0.0
  %v1885 = vmax.f32 %v1837, 0.0
  %v1886 = vmax.f32 %v1838, 0.0
  %v1887 = vmax.f32 %v1839, 0.0
  %v1888 = vmax.f32 %v1840, 0.0
  %v1889 = vmax.f32 %v1841, 0.0
  %v1890 = vmax.f32 %v1842, 0.0
  %v1891 = vmax.f32 %v1843, 0.0
  %v1892 = vmax.f32 %v1844, 0.0
  %v1893 = vmax.f32 %v1845, 0.0
  %v1894 = vmax.f32 %v1846, 0.0
  %v1895 = vmax.f32 %v1847, 0.0
  %v1896 = vmax.f32 %v1848, 0.0
  %v1897 = vmax.f32 %v1849, 0.0
  %v1898 = vmax.f32 %v1850, 0.0
  %v1899 = vmax.f32 %v1851, 0.0
  %v1900 = vmax.f32 %v1852, 0.0
  %v1901 = vmax.f32 %v1853, 0.0
  %v1902 = vmax.f32 %v1854, 0.0
  %v1903 = vmax.f32 %v1855, 0.0
  %v1904 = vmax.f32 %v1856, 0.0
  %v1905 = vmax.f32 %v1857, 0.0
  %v1906 = vmax.f32 %v1858, 0.0
  %v1907 = vmax.f32 %v1859, 0.0
  %v1908 = vmax.f32 %v1860, 0.0
  %v1909 = vmax.f32 %v1861, 0.0
  %v1910 = vmax.f32 %v1862, 0.0
  %v1911 = vmax.f32 %v1863, 0.0
  %v1912 = vmax.f32 %v1864, 0.0
  %v1913 = vmax.f32 %v1865, 0.0
  %v1914 = vmax.f32 %v1866, 0.0
  %v1915 = vmax.f32 %v1867, 0.0
  %v1916 = vmax.f32 %v1868, %v1869
  %v1917 = vmax.f32 %v1871, %v1872
  %v1918 = vmax.f32 %v1874, %v1875
  %v1919 = vmax.f32 %v1877, %v1878
  %v1920 = vmax.f32 %v1880, %v1881
  %v1921 = vmax.f32 %v1883, %v1884
  %v1922 = vmax.f32 %v1886, %v1887
  %v1923 = vmax.f32 %v1889, %v1890
  %v1924 = vmax.f32 %v1892, %v1893
  %v1925 = vmax.f32 %v1895, %v1896
  %v1926 = vmax.f32 %v1898, %v1899
  %v1927 = vmax.f32 %v1901, %v1902
  %v1928 = vmax.f32 %v1904, %v1905
  %v1929 = vmax.f32 %v1907, %v1908
  %v1930 = vmax.f32 %v1910, %v1911
  %v1931 = vmax.f32 %v1913, %v1914
  %v1932 = vmax.f32 %v1916, %v1870
  %v1933 = vmax.f32 %v1917, %v1873
  %v1934 = vmax.f32 %v1918, %v1876
  %v1935 = vmax.f32 %v1919, %v1879
  %v1936 = vmax.f32 %v1920, %v1882
  %v1937 = vmax.f32 %v1921, %v1885
  %v1938 = vmax.f32 %v1922, %v1888
  %v1939 = vmax.f32 %v1923, %v1891
  %v1940 = vmax.f32 %v1924, %v1894
  %v1941 = vmax.f32 %v1925, %v1897
  %v1942 = vmax.f32 %v1926, %v1900
  %v1943 = vmax.f32 %v1927, %v1903
  %v1944 = vmax.f32 %v1928, %v1906
  %v1945 = vmax.f32 %v1929, %v1909
  %v1946 = vmax.f32 %v1930, %v1912
  %v1947 = vmax.f32 %v1931, %v1915
  %vm1948 = vcmask 1042432
  %v1949 = vsel %vm1948, %v1932, -inf
  %v1950 = vrot.slane %v1949, 4
  %v1951 = vmax.f32 %v1949, %v1950
  %v1952 = vrot.slane %v1951, 2
  %v1953 = vmax.f32 %v1951, %v1952
  %v1954 = vrot.slane %v1953, 1
  %v1955 = vmax.f32 %v1953, %v1954
  %v1956 = vsel %vm1948, %v1934, -inf
  %v1957 = vrot.slane %v1956, 4
  %v1958 = vmax.f32 %v1956, %v1957
  %v1959 = vrot.slane %v1958, 2
  %v1960 = vmax.f32 %v1958, %v1959
  %v1961 = vrot.slane %v1960, 1
  %v1962 = vmax.f32 %v1960, %v1961
  %v1963 = vsel %vm1948, %v1936, -inf
  %v1964 = vrot.slane %v1963, 4
  %v1965 = vmax.f32 %v1963, %v1964
  %v1966 = vrot.slane %v1965, 2
  %v1967 = vmax.f32 %v1965, %v1966
  %v1968 = vrot.slane %v1967, 1
  %v1969 = vmax.f32 %v1967, %v1968
  %v1970 = vsel %vm1948, %v1938, -inf
  %v1971 = vrot.slane %v1970, 4
  %v1972 = vmax.f32 %v1970, %v1971
  %v1973 = vrot.slane %v1972, 2
  %v1974 = vmax.f32 %v1972, %v1973
  %v1975 = vrot.slane %v1974, 1
  %v1976 = vmax.f32 %v1974, %v1975
  %v1977 = vsel %vm1948, %v1940, -inf
  %v1978 = vrot.slane %v1977, 4
  %v1979 = vmax.f32 %v1977, %v1978
  %v1980 = vrot.slane %v1979, 2
  %v1981 = vmax.f32 %v1979, %v1980
  %v1982 = vrot.slane %v1981, 1
  %v1983 = vmax.f32 %v1981, %v1982
  %v1984 = vsel %vm1948, %v1942, -inf
  %v1985 = vrot.slane %v1984, 4
  %v1986 = vmax.f32 %v1984, %v1985
  %v1987 = vrot.slane %v1986, 2
  %v1988 = vmax.f32 %v1986, %v1987
  %v1989 = vrot.slane %v1988, 1
  %v1990 = vmax.f32 %v1988, %v1989
  %v1991 = vsel %vm1948, %v1944, -inf
  %v1992 = vrot.slane %v1991, 4
  %v1993 = vmax.f32 %v1991, %v1992
  %v1994 = vrot.slane %v1993, 2
  %v1995 = vmax.f32 %v1993, %v1994
  %v1996 = vrot.slane %v1995, 1
  %v1997 = vmax.f32 %v1995, %v1996
  %v1998 = vsel %vm1948, %v1946, -inf
  %v1999 = vrot.slane %v1998, 4
  %v2000 = vmax.f32 %v1998, %v1999
  %v2001 = vrot.slane %v2000, 2
  %v2002 = vmax.f32 %v2000, %v2001
  %v2003 = vrot.slane %v2002, 1
  %v2004 = vmax.f32 %v2002, %v2003
  %vm2005 = vcmask 1045507
  %v2006 = vsel %vm2005, %v1932, -inf
  %v2007 = vrot.slane %v2006, 4
  %v2008 = vmax.f32 %v2006, %v2007
  %v2009 = vrot.slane %v2008, 2
  %v2010 = vmax.f32 %v2008, %v2009
  %v2011 = vrot.slane %v2010, 1
  %v2012 = vmax.f32 %v2010, %v2011
  %v2013 = vsel %vm2005, %v1934, -inf
  %v2014 = vrot.slane %v2013, 4
  %v2015 = vmax.f32 %v2013, %v2014
  %v2016 = vrot.slane %v2015, 2
  %v2017 = vmax.f32 %v2015, %v2016
  %v2018 = vrot.slane %v2017, 1
  %v2019 = vmax.f32 %v2017, %v2018
  %v2020 = vsel %vm2005, %v1936, -inf
  %v2021 = vrot.slane %v2020, 4
  %v2022 = vmax.f32 %v2020, %v2021
  %v2023 = vrot.slane %v2022, 2
  %v2024 = vmax.f32 %v2022, %v2023
  %v2025 = vrot.slane %v2024, 1
  %v2026 = vmax.f32 %v2024, %v2025
  %v2027 = vsel %vm2005, %v1938, -inf
  %v2028 = vrot.slane %v2027, 4
  %v2029 = vmax.f32 %v2027, %v2028
  %v2030 = vrot.slane %v2029, 2
  %v2031 = vmax.f32 %v2029, %v2030
  %v2032 = vrot.slane %v2031, 1
  %v2033 = vmax.f32 %v2031, %v2032
  %v2034 = vsel %vm2005, %v1940, -inf
  %v2035 = vrot.slane %v2034, 4
  %v2036 = vmax.f32 %v2034, %v2035
  %v2037 = vrot.slane %v2036, 2
  %v2038 = vmax.f32 %v2036, %v2037
  %v2039 = vrot.slane %v2038, 1
  %v2040 = vmax.f32 %v2038, %v2039
  %v2041 = vsel %vm2005, %v1942, -inf
  %v2042 = vrot.slane %v2041, 4
  %v2043 = vmax.f32 %v2041, %v2042
  %v2044 = vrot.slane %v2043, 2
  %v2045 = vmax.f32 %v2043, %v2044
  %v2046 = vrot.slane %v2045, 1
  %v2047 = vmax.f32 %v2045, %v2046
  %v2048 = vsel %vm2005, %v1944, -inf
  %v2049 = vrot.slane %v2048, 4
  %v2050 = vmax.f32 %v2048, %v2049
  %v2051 = vrot.slane %v2050, 2
  %v2052 = vmax.f32 %v2050, %v2051
  %v2053 = vrot.slane %v2052, 1
  %v2054 = vmax.f32 %v2052, %v2053
  %v2055 = vsel %vm2005, %v1946, -inf
  %v2056 = vrot.slane %v2055, 4
  %v2057 = vmax.f32 %v2055, %v2056
  %v2058 = vrot.slane %v2057, 2
  %v2059 = vmax.f32 %v2057, %v2058
  %v2060 = vrot.slane %v2059, 1
  %v2061 = vmax.f32 %v2059, %v2060
  %vm2062 = vcmask 1047558
  %v2063 = vsel %vm2062, %v1932, -inf
  %vm2064 = vcmask 1040384
  %v2065 = vsel %vm2064, %v1933, -inf
  %v2066 = vmax.f32 %v2063, %v2065
  %v2067 = vrot.slane %v2066, 4
  %v2068 = vmax.f32 %v2066, %v2067
  %v2069 = vrot.slane %v2068, 2
  %v2070 = vmax.f32 %v2068, %v2069
  %v2071 = vrot.slane %v2070, 1
  %v2072 = vmax.f32 %v2070, %v2071
  %v2073 = vsel %vm2062, %v1934, -inf
  %v2074 = vsel %vm2064, %v1935, -inf
  %v2075 = vmax.f32 %v2073, %v2074
  %v2076 = vrot.slane %v2075, 4
  %v2077 = vmax.f32 %v2075, %v2076
  %v2078 = vrot.slane %v2077, 2
  %v2079 = vmax.f32 %v2077, %v2078
  %v2080 = vrot.slane %v2079, 1
  %v2081 = vmax.f32 %v2079, %v2080
  %v2082 = vsel %vm2062, %v1936, -inf
  %v2083 = vsel %vm2064, %v1937, -inf
  %v2084 = vmax.f32 %v2082, %v2083
  %v2085 = vrot.slane %v2084, 4
  %v2086 = vmax.f32 %v2084, %v2085
  %v2087 = vrot.slane %v2086, 2
  %v2088 = vmax.f32 %v2086, %v2087
  %v2089 = vrot.slane %v2088, 1
  %v2090 = vmax.f32 %v2088, %v2089
  %v2091 = vsel %vm2062, %v1938, -inf
  %v2092 = vsel %vm2064, %v1939, -inf
  %v2093 = vmax.f32 %v2091, %v2092
  %v2094 = vrot.slane %v2093, 4
  %v2095 = vmax.f32 %v2093, %v2094
  %v2096 = vrot.slane %v2095, 2
  %v2097 = vmax.f32 %v2095, %v2096
  %v2098 = vrot.slane %v2097, 1
  %v2099 = vmax.f32 %v2097, %v2098
  %v2100 = vsel %vm2062, %v1940, -inf
  %v2101 = vsel %vm2064, %v1941, -inf
  %v2102 = vmax.f32 %v2100, %v2101
  %v2103 = vrot.slane %v2102, 4
  %v2104 = vmax.f32 %v2102, %v2103
  %v2105 = vrot.slane %v2104, 2
  %v2106 = vmax.f32 %v2104, %v2105
  %v2107 = vrot.slane %v2106, 1
  %v2108 = vmax.f32 %v2106, %v2107
  %v2109 = vsel %vm2062, %v1942, -inf
  %v2110 = vsel %vm2064, %v1943, -inf
  %v2111 = vmax.f32 %v2109, %v2110
  %v2112 = vrot.slane %v2111, 4
  %v2113 = vmax.f32 %v2111, %v2112
  %v2114 = vrot.slane %v2113, 2
  %v2115 = vmax.f32 %v2113, %v2114
  %v2116 = vrot.slane %v2115, 1
  %v2117 = vmax.f32 %v2115, %v2116
  %v2118 = vsel %vm2062, %v1944, -inf
  %v2119 = vsel %vm2064, %v1945, -inf
  %v2120 = vmax.f32 %v2118, %v2119
  %v2121 = vrot.slane %v2120, 4
  %v2122 = vmax.f32 %v2120, %v2121
  %v2123 = vrot.slane %v2122, 2
  %v2124 = vmax.f32 %v2122, %v2123
  %v2125 = vrot.slane %v2124, 1
  %v2126 = vmax.f32 %v2124, %v2125
  %v2127 = vsel %vm2062, %v1946, -inf
  %v2128 = vsel %vm2064, %v1947, -inf
  %v2129 = vmax.f32 %v2127, %v2128
  %v2130 = vrot.slane %v2129, 4
  %v2131 = vmax.f32 %v2129, %v2130
  %v2132 = vrot.slane %v2131, 2
  %v2133 = vmax.f32 %v2131, %v2132
  %v2134 = vrot.slane %v2133, 1
  %v2135 = vmax.f32 %v2133, %v2134
  %vm2136 = vcmask 1043457
  %v2137 = vsel %vm2136, %v1933, -inf
  %v2138 = vrot.slane %v2137, 4
  %v2139 = vmax.f32 %v2137, %v2138
  %v2140 = vrot.slane %v2139, 2
  %v2141 = vmax.f32 %v2139, %v2140
  %v2142 = vrot.slane %v2141, 1
  %v2143 = vmax.f32 %v2141, %v2142
  %v2144 = vsel %vm2136, %v1935, -inf
  %v2145 = vrot.slane %v2144, 4
  %v2146 = vmax.f32 %v2144, %v2145
  %v2147 = vrot.slane %v2146, 2
  %v2148 = vmax.f32 %v2146, %v2147
  %v2149 = vrot.slane %v2148, 1
  %v2150 = vmax.f32 %v2148, %v2149
  %v2151 = vsel %vm2136, %v1937, -inf
  %v2152 = vrot.slane %v2151, 4
  %v2153 = vmax.f32 %v2151, %v2152
  %v2154 = vrot.slane %v2153, 2
  %v2155 = vmax.f32 %v2153, %v2154
  %v2156 = vrot.slane %v2155, 1
  %v2157 = vmax.f32 %v2155, %v2156
  %v2158 = vsel %vm2136, %v1939, -inf
  %v2159 = vrot.slane %v2158, 4
  %v2160 = vmax.f32 %v2158, %v2159
  %v2161 = vrot.slane %v2160, 2
  %v2162 = vmax.f32 %v2160, %v2161
  %v2163 = vrot.slane %v2162, 1
  %v2164 = vmax.f32 %v2162, %v2163
  %v2165 = vsel %vm2136, %v1941, -inf
  %v2166 = vrot.slane %v2165, 4
  %v2167 = vmax.f32 %v2165, %v2166
  %v2168 = vrot.slane %v2167, 2
  %v2169 = vmax.f32 %v2167, %v2168
  %v2170 = vrot.slane %v2169, 1
  %v2171 = vmax.f32 %v2169, %v2170
  %v2172 = vsel %vm2136, %v1943, -inf
  %v2173 = vrot.slane %v2172, 4
  %v2174 = vmax.f32 %v2172, %v2173
  %v2175 = vrot.slane %v2174, 2
  %v2176 = vmax.f32 %v2174, %v2175
  %v2177 = vrot.slane %v2176, 1
  %v2178 = vmax.f32 %v2176, %v2177
  %v2179 = vsel %vm2136, %v1945, -inf
  %v2180 = vrot.slane %v2179, 4
  %v2181 = vmax.f32 %v2179, %v2180
  %v2182 = vrot.slane %v2181, 2
  %v2183 = vmax.f32 %v2181, %v2182
  %v2184 = vrot.slane %v2183, 1
  %v2185 = vmax.f32 %v2183, %v2184
  %v2186 = vsel %vm2136, %v1947, -inf
  %v2187 = vrot.slane %v2186, 4
  %v2188 = vmax.f32 %v2186, %v2187
  %v2189 = vrot.slane %v2188, 2
  %v2190 = vmax.f32 %v2188, %v2189
  %v2191 = vrot.slane %v2190, 1
  %v2192 = vmax.f32 %v2190, %v2191
  %vm2201 = vcmask 1041409
  %v2202 = vsel %vm2201, %v1962, %v1955
  %vm2203 = vcmask 1042434
  %v2204 = vsel %vm2203, %v1969, %v2202
  %vm2205 = vcmask 1043459
  %v2206 = vsel %vm2205, %v1976, %v2204
  %vm2207 = vcmask 1044484
  %v2208 = vsel %vm2207, %v1983, %v2206
  %vm2209 = vcmask 1045509
  %v2210 = vsel %vm2209, %v1990, %v2208
  %vm2211 = vcmask 1046534
  %v2212 = vsel %vm2211, %v1997, %v2210
  %vm2213 = vcmask 1047559
  %v2214 = vsel %vm2213, %v2004, %v2212
  %v2224 = vsel %vm2201, %v2019, %v2012
  %v2225 = vsel %vm2203, %v2026, %v2224
  %v2226 = vsel %vm2205, %v2033, %v2225
  %v2227 = vsel %vm2207, %v2040, %v2226
  %v2228 = vsel %vm2209, %v2047, %v2227
  %v2229 = vsel %vm2211, %v2054, %v2228
  %v2230 = vsel %vm2213, %v2061, %v2229
  %v2240 = vsel %vm2201, %v2081, %v2072
  %v2241 = vsel %vm2203, %v2090, %v2240
  %v2242 = vsel %vm2205, %v2099, %v2241
  %v2243 = vsel %vm2207, %v2108, %v2242
  %v2244 = vsel %vm2209, %v2117, %v2243
  %v2245 = vsel %vm2211, %v2126, %v2244
  %v2246 = vsel %vm2213, %v2135, %v2245
  %v2256 = vsel %vm2201, %v2150, %v2143
  %v2257 = vsel %vm2203, %v2157, %v2256
  %v2258 = vsel %vm2205, %v2164, %v2257
  %v2259 = vsel %vm2207, %v2171, %v2258
  %v2260 = vsel %vm2209, %v2178, %v2259
  %v2261 = vsel %vm2211, %v2185, %v2260
  %v2262 = vsel %vm2213, %v2192, %v2261
  %2264 = vst [vmem:[%s9] sm:$0xff] %v2214
  %2265 = vst [vmem:[%s9 + $0x8] sm:$0xff] %v2230
  %2266 = vst [vmem:[%s9 + $0x10] sm:$0xff] %v2246
  %2267 = vst [vmem:[%s9 + $0x18] sm:$0xff] %v2262
  %v2268 = vpack.c.bf16 %v2214, %v2214
  %v2269 = vpack.c.bf16 %v2230, %v2230
  %v2270 = vpack.c.bf16 %v2246, %v2246
  %v2271 = vpack.c.bf16 %v2262, %v2262
  %v2272 = vld [vmem:[%s4] sm:$0xf]
  %v2273 = vld [vmem:[%s4 + $0x4] sm:$0xf]
  %v2274 = vld [vmem:[%s4 + $0x8] sm:$0xf]
  %v2275 = vld [vmem:[%s4 + $0xc] sm:$0xf]
  %v2276 = vld [vmem:[%s4 + $0x10] sm:$0xf]
  %v2277 = vld [vmem:[%s4 + $0x14] sm:$0xf]
  %v2278 = vld [vmem:[%s4 + $0x18] sm:$0xf]
  %v2279 = vld [vmem:[%s4 + $0x1c] sm:$0xf]
  %v2280 = vld [vmem:[%s4 + $0x20] sm:$0xf]
  %v2281 = vld [vmem:[%s4 + $0x24] sm:$0xf]
  %v2282 = vld [vmem:[%s4 + $0x28] sm:$0xf]
  %v2283 = vld [vmem:[%s4 + $0x2c] sm:$0xf]
  %v2284 = vld [vmem:[%s4 + $0x30] sm:$0xf]
  %v2285 = vld [vmem:[%s4 + $0x34] sm:$0xf]
  %v2286 = vld [vmem:[%s4 + $0x38] sm:$0xf]
  %v2287 = vld [vmem:[%s4 + $0x3c] sm:$0xf]
  %v2288 = vld [vmem:[%s4 + $0x40] sm:$0xf]
  %v2289 = vld [vmem:[%s4 + $0x44] sm:$0xf]
  %v2290 = vld [vmem:[%s4 + $0x48] sm:$0xf]
  %v2291 = vld [vmem:[%s4 + $0x4c] sm:$0xf]
  %v2292 = vld [vmem:[%s4 + $0x50] sm:$0xf]
  %v2293 = vld [vmem:[%s4 + $0x54] sm:$0xf]
  %v2294 = vld [vmem:[%s4 + $0x58] sm:$0xf]
  %v2295 = vld [vmem:[%s4 + $0x5c] sm:$0xf]
  %v2296 = vld [vmem:[%s4 + $0x60] sm:$0xf]
  %v2297 = vld [vmem:[%s4 + $0x64] sm:$0xf]
  %v2298 = vld [vmem:[%s4 + $0x68] sm:$0xf]
  %v2299 = vld [vmem:[%s4 + $0x6c] sm:$0xf]
  %v2300 = vld [vmem:[%s4 + $0x70] sm:$0xf]
  %v2301 = vld [vmem:[%s4 + $0x74] sm:$0xf]
  %v2302 = vld [vmem:[%s4 + $0x78] sm:$0xf]
  %v2303 = vld [vmem:[%s4 + $0x7c] sm:$0xf]
  %v2304 = vld [vmem:[%s4 + $0x80] sm:$0xf]
  %v2305 = vld [vmem:[%s4 + $0x84] sm:$0xf]
  %v2306 = vld [vmem:[%s4 + $0x88] sm:$0xf]
  %v2307 = vld [vmem:[%s4 + $0x8c] sm:$0xf]
  %v2308 = vld [vmem:[%s4 + $0x90] sm:$0xf]
  %v2309 = vld [vmem:[%s4 + $0x94] sm:$0xf]
  %v2310 = vld [vmem:[%s4 + $0x98] sm:$0xf]
  %v2311 = vld [vmem:[%s4 + $0x9c] sm:$0xf]
  %v2312 = vld [vmem:[%s4 + $0xa0] sm:$0xf]
  %v2313 = vld [vmem:[%s4 + $0xa4] sm:$0xf]
  %v2314 = vld [vmem:[%s4 + $0xa8] sm:$0xf]
  %v2315 = vld [vmem:[%s4 + $0xac] sm:$0xf]
  %v2316 = vld [vmem:[%s4 + $0xb0] sm:$0xf]
  %v2317 = vld [vmem:[%s4 + $0xb4] sm:$0xf]
  %v2318 = vld [vmem:[%s4 + $0xb8] sm:$0xf]
  %v2319 = vld [vmem:[%s4 + $0xbc] sm:$0xf]
  %v2320 = vld [vmem:[%s4 + $0xc0] sm:$0xf]
  %v2321 = vld [vmem:[%s4 + $0xc4] sm:$0xf]
  %v2322 = vld [vmem:[%s4 + $0xc8] sm:$0xf]
  %v2323 = vld [vmem:[%s4 + $0xcc] sm:$0xf]
  %v2324 = vld [vmem:[%s4 + $0xd0] sm:$0xf]
  %v2325 = vld [vmem:[%s4 + $0xd4] sm:$0xf]
  %v2326 = vld [vmem:[%s4 + $0xd8] sm:$0xf]
  %v2327 = vld [vmem:[%s4 + $0xdc] sm:$0xf]
  %v2328 = vld [vmem:[%s4 + $0xe0] sm:$0xf]
  %v2329 = vld [vmem:[%s4 + $0xe4] sm:$0xf]
  %v2330 = vld [vmem:[%s4 + $0xe8] sm:$0xf]
  %v2331 = vld [vmem:[%s4 + $0xec] sm:$0xf]
  %v2332 = vld [vmem:[%s4 + $0xf0] sm:$0xf]
  %v2333 = vld [vmem:[%s4 + $0xf4] sm:$0xf]
  %v2334 = vld [vmem:[%s4 + $0xf8] sm:$0xf]
  %v2335 = vld [vmem:[%s4 + $0xfc] sm:$0xf]
  %v2336 = vld [vmem:[%s1] sm:$0xff]
  %v2337 = vld [vmem:[%s5] sm:$0x1]
  %2339 = vset.pattern.permute.xlu0 0
  %2340 = vperm.xlu0 %2339, %v2336
  %v2341 = vpop.permute.xlu0 %2340
  %v2344 = vlaneseq
  %v2345 = vshrl.u32 %v2344, 7
  %v2346 = vsub.s32 0, %v2345
  %v2347 = vrot.slane %v2337, %v2346
  %v2349 = vmul.f32 %v2341, %v2347
  %v2414 = vunpack.c.l.b16 %v2272
  %v2415 = vunpack.c.l.b16 %v2273
  %v2416 = vunpack.c.l.b16 %v2274
  %v2417 = vunpack.c.l.b16 %v2275
  %v2418 = vunpack.c.l.b16 %v2276
  %v2419 = vunpack.c.l.b16 %v2277
  %v2420 = vunpack.c.l.b16 %v2278
  %v2421 = vunpack.c.l.b16 %v2279
  %v2422 = vunpack.c.l.b16 %v2280
  %v2423 = vunpack.c.l.b16 %v2281
  %v2424 = vunpack.c.l.b16 %v2282
  %v2425 = vunpack.c.l.b16 %v2283
  %v2426 = vunpack.c.l.b16 %v2284
  %v2427 = vunpack.c.l.b16 %v2285
  %v2428 = vunpack.c.l.b16 %v2286
  %v2429 = vunpack.c.l.b16 %v2287
  %v2430 = vunpack.c.l.b16 %v2288
  %v2431 = vunpack.c.l.b16 %v2289
  %v2432 = vunpack.c.l.b16 %v2290
  %v2433 = vunpack.c.l.b16 %v2291
  %v2434 = vunpack.c.l.b16 %v2292
  %v2435 = vunpack.c.l.b16 %v2293
  %v2436 = vunpack.c.l.b16 %v2294
  %v2437 = vunpack.c.l.b16 %v2295
  %v2438 = vunpack.c.l.b16 %v2296
  %v2439 = vunpack.c.l.b16 %v2297
  %v2440 = vunpack.c.l.b16 %v2298
  %v2441 = vunpack.c.l.b16 %v2299
  %v2442 = vunpack.c.l.b16 %v2300
  %v2443 = vunpack.c.l.b16 %v2301
  %v2444 = vunpack.c.l.b16 %v2302
  %v2445 = vunpack.c.l.b16 %v2303
  %v2446 = vunpack.c.l.b16 %v2304
  %v2447 = vunpack.c.l.b16 %v2305
  %v2448 = vunpack.c.l.b16 %v2306
  %v2449 = vunpack.c.l.b16 %v2307
  %v2450 = vunpack.c.l.b16 %v2308
  %v2451 = vunpack.c.l.b16 %v2309
  %v2452 = vunpack.c.l.b16 %v2310
  %v2453 = vunpack.c.l.b16 %v2311
  %v2454 = vunpack.c.l.b16 %v2312
  %v2455 = vunpack.c.l.b16 %v2313
  %v2456 = vunpack.c.l.b16 %v2314
  %v2457 = vunpack.c.l.b16 %v2315
  %v2458 = vunpack.c.l.b16 %v2316
  %v2459 = vunpack.c.l.b16 %v2317
  %v2460 = vunpack.c.l.b16 %v2318
  %v2461 = vunpack.c.l.b16 %v2319
  %v2462 = vunpack.c.l.b16 %v2320
  %v2463 = vunpack.c.l.b16 %v2321
  %v2464 = vunpack.c.l.b16 %v2322
  %v2465 = vunpack.c.l.b16 %v2323
  %v2466 = vunpack.c.l.b16 %v2324
  %v2467 = vunpack.c.l.b16 %v2325
  %v2468 = vunpack.c.l.b16 %v2326
  %v2469 = vunpack.c.l.b16 %v2327
  %v2470 = vunpack.c.l.b16 %v2328
  %v2471 = vunpack.c.l.b16 %v2329
  %v2472 = vunpack.c.l.b16 %v2330
  %v2473 = vunpack.c.l.b16 %v2331
  %v2474 = vunpack.c.l.b16 %v2332
  %v2475 = vunpack.c.l.b16 %v2333
  %v2476 = vunpack.c.l.b16 %v2334
  %v2477 = vunpack.c.l.b16 %v2335
  %v2478 = vpack.c.b16 %v2415, %v2414
  %v2479 = vpack.c.b16 %v2417, %v2416
  %v2480 = vpack.c.b16 %v2419, %v2418
  %v2481 = vpack.c.b16 %v2421, %v2420
  %v2482 = vpack.c.b16 %v2423, %v2422
  %v2483 = vpack.c.b16 %v2425, %v2424
  %v2484 = vpack.c.b16 %v2427, %v2426
  %v2485 = vpack.c.b16 %v2429, %v2428
  %v2486 = vpack.c.b16 %v2431, %v2430
  %v2487 = vpack.c.b16 %v2433, %v2432
  %v2488 = vpack.c.b16 %v2435, %v2434
  %v2489 = vpack.c.b16 %v2437, %v2436
  %v2490 = vpack.c.b16 %v2439, %v2438
  %v2491 = vpack.c.b16 %v2441, %v2440
  %v2492 = vpack.c.b16 %v2443, %v2442
  %v2493 = vpack.c.b16 %v2445, %v2444
  %v2494 = vpack.c.b16 %v2447, %v2446
  %v2495 = vpack.c.b16 %v2449, %v2448
  %v2496 = vpack.c.b16 %v2451, %v2450
  %v2497 = vpack.c.b16 %v2453, %v2452
  %v2498 = vpack.c.b16 %v2455, %v2454
  %v2499 = vpack.c.b16 %v2457, %v2456
  %v2500 = vpack.c.b16 %v2459, %v2458
  %v2501 = vpack.c.b16 %v2461, %v2460
  %v2502 = vpack.c.b16 %v2463, %v2462
  %v2503 = vpack.c.b16 %v2465, %v2464
  %v2504 = vpack.c.b16 %v2467, %v2466
  %v2505 = vpack.c.b16 %v2469, %v2468
  %v2506 = vpack.c.b16 %v2471, %v2470
  %v2507 = vpack.c.b16 %v2473, %v2472
  %v2508 = vpack.c.b16 %v2475, %v2474
  %v2509 = vpack.c.b16 %v2477, %v2476
  %2542 = vmatprep.subr.bf16.mxu0 0
  %2543 = vmatpush1.bf16.msra.mxu0 %v2478
  %2544 = vmatprep.subr.bf16.mxu0 0
  %2545 = vmatpush1.bf16.msra.mxu0 %v2479
  %2546 = vmatprep.subr.bf16.mxu0 0
  %2547 = vmatpush1.bf16.msra.mxu0 %v2480
  %2548 = vmatprep.subr.bf16.mxu0 0
  %2549 = vmatpush1.bf16.msra.mxu0 %v2481
  %2550 = vmatprep.subr.bf16.mxu0 0
  %2551 = vmatpush1.bf16.msra.mxu0 %v2482
  %2552 = vmatprep.subr.bf16.mxu0 0
  %2553 = vmatpush1.bf16.msra.mxu0 %v2483
  %2554 = vmatprep.subr.bf16.mxu0 0
  %2555 = vmatpush1.bf16.msra.mxu0 %v2484
  %2556 = vmatprep.subr.bf16.mxu0 0
  %2557 = vmatpush1.bf16.msra.mxu0 %v2485
  %2558 = vmatprep.subr.bf16.mxu0 0
  %2559 = vmatpush1.bf16.msra.mxu0 %v2486
  %2560 = vmatprep.subr.bf16.mxu0 0
  %2561 = vmatpush1.bf16.msra.mxu0 %v2487
  %2562 = vmatprep.subr.bf16.mxu0 0
  %2563 = vmatpush1.bf16.msra.mxu0 %v2488
  %2564 = vmatprep.subr.bf16.mxu0 0
  %2565 = vmatpush1.bf16.msra.mxu0 %v2489
  %2566 = vmatprep.subr.bf16.mxu0 0
  %2567 = vmatpush1.bf16.msra.mxu0 %v2490
  %2568 = vmatprep.subr.bf16.mxu0 0
  %2569 = vmatpush1.bf16.msra.mxu0 %v2491
  %2570 = vmatprep.subr.bf16.mxu0 0
  %2571 = vmatpush1.bf16.msra.mxu0 %v2492
  %2572 = vmatprep.subr.bf16.mxu0 0
  %2573 = vmatpush1.bf16.msra.mxu0 %v2493
  %2574 = vmatprep.mubr.bf16.mxu0 %v2269
  %2575 = vmatmul.mubr.bf16.gmra.mrb[0].mxu0 %v2268
  %v2576 = vpop.f32.mrb[0].mxu0
  %v2577 = vadd.f32 %v2349, %v2576
  %v2578 = vpop.f32.mrb[0].mxu0
  %v2579 = vpop.f32.mrb[0].mxu0
  %v2580 = vpop.f32.mrb[0].mxu0
  %2581 = vdwg.mxu0
  %2582 = vmatprep.subr.bf16.mxu0 0
  %2583 = vmatpush1.bf16.msra.mxu0 %v2494
  %2584 = vmatprep.subr.bf16.mxu0 0
  %2585 = vmatpush1.bf16.msra.mxu0 %v2495
  %2586 = vmatprep.subr.bf16.mxu0 0
  %2587 = vmatpush1.bf16.msra.mxu0 %v2496
  %2588 = vmatprep.subr.bf16.mxu0 0
  %2589 = vmatpush1.bf16.msra.mxu0 %v2497
  %2590 = vmatprep.subr.bf16.mxu0 0
  %2591 = vmatpush1.bf16.msra.mxu0 %v2498
  %2592 = vmatprep.subr.bf16.mxu0 0
  %2593 = vmatpush1.bf16.msra.mxu0 %v2499
  %2594 = vmatprep.subr.bf16.mxu0 0
  %2595 = vmatpush1.bf16.msra.mxu0 %v2500
  %2596 = vmatprep.subr.bf16.mxu0 0
  %2597 = vmatpush1.bf16.msra.mxu0 %v2501
  %2598 = vmatprep.subr.bf16.mxu0 0
  %2599 = vmatpush1.bf16.msra.mxu0 %v2502
  %2600 = vmatprep.subr.bf16.mxu0 0
  %2601 = vmatpush1.bf16.msra.mxu0 %v2503
  %2602 = vmatprep.subr.bf16.mxu0 0
  %2603 = vmatpush1.bf16.msra.mxu0 %v2504
  %2604 = vmatprep.subr.bf16.mxu0 0
  %2605 = vmatpush1.bf16.msra.mxu0 %v2505
  %2606 = vmatprep.subr.bf16.mxu0 0
  %2607 = vmatpush1.bf16.msra.mxu0 %v2506
  %2608 = vmatprep.subr.bf16.mxu0 0
  %2609 = vmatpush1.bf16.msra.mxu0 %v2507
  %2610 = vmatprep.subr.bf16.mxu0 0
  %2611 = vmatpush1.bf16.msra.mxu0 %v2508
  %2612 = vmatprep.subr.bf16.mxu0 0
  %2613 = vmatpush1.bf16.msra.mxu0 %v2509
  %2614 = vmatprep.mubr.bf16.mxu0 %v2271
  %2615 = vmatmul.mubr.bf16.gmra.mrb[0].mxu0 %v2270
  %v2616 = vpop.f32.mrb[0].mxu0
  %v2617 = vadd.f32 %v2577, %v2616
  %v2618 = vpop.f32.mrb[0].mxu0
  %v2619 = vpop.f32.mrb[0].mxu0
  %v2620 = vpop.f32.mrb[0].mxu0
  %2621 = vdwg.mxu0
  %v2622 = vld [vmem:[%s6] sm:$0x1]
  %v2624 = vlaneseq
  %v2625 = vshrl.u32 %v2624, 7
  %v2626 = vsub.s32 0, %v2625
  %v2627 = vrot.slane %v2622, %v2626
  %v2629 = vadd.f32 %v2617, %v2627
  %v2630 = vmax.f32 %v2629, 0.0
  %v2631 = vpack.c.bf16 %v2630, %v2630
  %v2632 = vld [vmem:[%s7] sm:$0xf]
  %v2633 = vld [vmem:[%s7 + $0x4] sm:$0xf]
  %v2634 = vld [vmem:[%s7 + $0x8] sm:$0xf]
  %v2635 = vld [vmem:[%s7 + $0xc] sm:$0xf]
  %v2636 = vld [vmem:[%s7 + $0x10] sm:$0xf]
  %v2637 = vld [vmem:[%s7 + $0x14] sm:$0xf]
  %v2638 = vld [vmem:[%s7 + $0x18] sm:$0xf]
  %v2639 = vld [vmem:[%s7 + $0x1c] sm:$0xf]
  %v2640 = vld [vmem:[%s7 + $0x20] sm:$0xf]
  %v2641 = vld [vmem:[%s7 + $0x24] sm:$0xf]
  %v2642 = vld [vmem:[%s7 + $0x28] sm:$0xf]
  %v2643 = vld [vmem:[%s7 + $0x2c] sm:$0xf]
  %v2644 = vld [vmem:[%s7 + $0x30] sm:$0xf]
  %v2645 = vld [vmem:[%s7 + $0x34] sm:$0xf]
  %v2646 = vld [vmem:[%s7 + $0x38] sm:$0xf]
  %v2647 = vld [vmem:[%s7 + $0x3c] sm:$0xf]
  %v2648 = vld [vmem:[%s8] sm:$0x1]
  %v2650 = vlaneseq
  %v2651 = vshrl.u32 %v2650, 7
  %v2652 = vsub.s32 0, %v2651
  %v2653 = vrot.slane %v2648, %v2652
  %v2671 = vunpack.c.l.b16 %v2632
  %v2672 = vunpack.c.l.b16 %v2633
  %v2673 = vunpack.c.l.b16 %v2634
  %v2674 = vunpack.c.l.b16 %v2635
  %v2675 = vunpack.c.l.b16 %v2636
  %v2676 = vunpack.c.l.b16 %v2637
  %v2677 = vunpack.c.l.b16 %v2638
  %v2678 = vunpack.c.l.b16 %v2639
  %v2679 = vunpack.c.l.b16 %v2640
  %v2680 = vunpack.c.l.b16 %v2641
  %v2681 = vunpack.c.l.b16 %v2642
  %v2682 = vunpack.c.l.b16 %v2643
  %v2683 = vunpack.c.l.b16 %v2644
  %v2684 = vunpack.c.l.b16 %v2645
  %v2685 = vunpack.c.l.b16 %v2646
  %v2686 = vunpack.c.l.b16 %v2647
  %v2687 = vpack.c.b16 %v2672, %v2671
  %v2688 = vpack.c.b16 %v2674, %v2673
  %v2689 = vpack.c.b16 %v2676, %v2675
  %v2690 = vpack.c.b16 %v2678, %v2677
  %v2691 = vpack.c.b16 %v2680, %v2679
  %v2692 = vpack.c.b16 %v2682, %v2681
  %v2693 = vpack.c.b16 %v2684, %v2683
  %v2694 = vpack.c.b16 %v2686, %v2685
  %2703 = vmatprep.subr.bf16.mxu0 0
  %2704 = vmatpush1.bf16.msra.mxu0 %v2687
  %2705 = vmatprep.subr.bf16.mxu0 0
  %2706 = vmatpush1.bf16.msra.mxu0 %v2688
  %2707 = vmatprep.subr.bf16.mxu0 0
  %2708 = vmatpush1.bf16.msra.mxu0 %v2689
  %2709 = vmatprep.subr.bf16.mxu0 0
  %2710 = vmatpush1.bf16.msra.mxu0 %v2690
  %2711 = vmatprep.subr.bf16.mxu0 0
  %2712 = vmatpush1.bf16.msra.mxu0 %v2691
  %2713 = vmatprep.subr.bf16.mxu0 0
  %2714 = vmatpush1.bf16.msra.mxu0 %v2692
  %2715 = vmatprep.subr.bf16.mxu0 0
  %2716 = vmatpush1.bf16.msra.mxu0 %v2693
  %2717 = vmatprep.subr.bf16.mxu0 0
  %2718 = vmatpush1.bf16.msra.mxu0 %v2694
  %2719 = vmatprep.subr.bf16.mxu0 0
  %2720 = vmatpush1.bf16.msra.mxu0 0
  %2721 = vmatprep.subr.bf16.mxu0 0
  %2722 = vmatpush1.bf16.msra.mxu0 0
  %2723 = vmatprep.subr.bf16.mxu0 0
  %2724 = vmatpush1.bf16.msra.mxu0 0
  %2725 = vmatprep.subr.bf16.mxu0 0
  %2726 = vmatpush1.bf16.msra.mxu0 0
  %2727 = vmatprep.subr.bf16.mxu0 0
  %2728 = vmatpush1.bf16.msra.mxu0 0
  %2729 = vmatprep.subr.bf16.mxu0 0
  %2730 = vmatpush1.bf16.msra.mxu0 0
  %2731 = vmatprep.subr.bf16.mxu0 0
  %2732 = vmatpush1.bf16.msra.mxu0 0
  %2733 = vmatprep.subr.bf16.mxu0 0
  %2734 = vmatpush1.bf16.msra.mxu0 0
  %2735 = vmatprep.mubr.bf16.mxu0 0
  %2736 = vmatmul.mubr.bf16.gmra.mrb[0].mxu0 %v2631
  %v2737 = vpop.f32.mrb[0].mxu0
  %v2738 = vadd.f32 %v2653, %v2737
  %v2739 = vpop.f32.mrb[0].mxu0
  %v2740 = vpop.f32.mrb[0].mxu0
  %v2741 = vpop.f32.mrb[0].mxu0
  %2742 = vdwg.mxu0
  %2743 = vst [vmem:[%s10] sm:$0xff] %v2738
  // Predicated region
  $region38: #{cnn2_forward.1} parent=0 // pred_check
    _
  $region39: #{cnn2_forward.1} parent=0 // pred_check_branch
    %2745 = sbr.rel (0) target = $region41
  $region40: #{cnn2_forward.1} parent=0 // pred_region
    _
  $region41: #{cnn2_forward.1} parent=0 // pred_fallthru
    _
  // Predicated region
  $region42: #{cnn2_forward.1} parent=0 // pred_check
    _
  $region43: #{cnn2_forward.1} parent=0 // pred_check_branch
    %2747 = sbr.rel (0) target = $region45
  $region44: #{cnn2_forward.1} parent=0 // pred_region
    _
  $region45: #{cnn2_forward.1} parent=0 // pred_fallthru
    _
  // Predicated region
  $region46: #{cnn2_forward.1} parent=0 // pred_check
    _
  $region47: #{cnn2_forward.1} parent=0 // pred_check_branch
    %2749 = sbr.rel (0) target = $region49
  $region48: #{cnn2_forward.1} parent=0 // pred_region
    _
  $region49: #{cnn2_forward.1} parent=0 // pred_fallthru
    _
  // Predicated region
  $region50: #{cnn2_forward.1} parent=0 // pred_check
    _
  $region51: #{cnn2_forward.1} parent=0 // pred_check_branch
    %2751 = sbr.rel (0) target = $region53
  $region52: #{cnn2_forward.1} parent=0 // pred_region
    _
  $region53: #{cnn2_forward.1} parent=0 // pred_fallthru
    _

</llo_original>
